<compile_context>
chip_gen: v7x
topology: tpu7x:2x2x1
jax: 0.10.0
libtpu: 0.0.40
codegen_flags: <defaults>
</compile_context>

<pallas_src>
import math

import jax
import jax.numpy as jnp
from jax.experimental import pallas as pl
from jax.experimental.pallas import tpu as pltpu


def _round_up(x, m):
    return ((x + m - 1) // m) * m


def _actor_kernel(scale_ref, s_ref, w1_ref, b1_ref, w2_ref, b2_ref,
                  w3_ref, b3_ref, o_ref):
    # fc1 + ReLU  (bf16 inputs, f32 MXU accumulation)
    x = s_ref[...].astype(jnp.bfloat16)
    h1 = jnp.dot(x, w1_ref[...], preferred_element_type=jnp.float32)
    h1 = jnp.maximum(h1 + b1_ref[...], 0.0).astype(jnp.bfloat16)
    # fc2 + ReLU
    h2 = jnp.dot(h1, w2_ref[...], preferred_element_type=jnp.float32)
    h2 = jnp.maximum(h2 + b2_ref[...], 0.0).astype(jnp.bfloat16)
    # fc3 + tanh * max_action (scalar read from SMEM)
    h3 = jnp.dot(h2, w3_ref[...], preferred_element_type=jnp.float32)
    scale = scale_ref[0, 0]
    o_ref[...] = (scale * jnp.tanh(h3 + b3_ref[...])).astype(o_ref.dtype)


def actor_forward(state, params, max_action, *, block_b=256):
    """Run the Actor MLP forward pass in a single Pallas kernel.

    state:  [B, state_dim] float32
    params: dict with w1[state_dim,1024], b1[1,1024], w2[1024,512], b2[1,512],
            w3[512,action_dim], b3[1,action_dim]  (f32 masters; weights are
            streamed to the kernel in bf16)
    max_action: python float or traced scalar.
    """
    B, state_dim = state.shape
    h1_dim = params["w1"].shape[1]
    h2_dim = params["w2"].shape[1]
    action_dim = params["w3"].shape[1]
    action_pad = _round_up(action_dim, 128)          # lane-dense output slab

    # Batch tiling: multiple of 8 (sublanes); cap the tile so intermediates +
    # resident weights stay well inside v7x's 64 MiB VMEM.
    if B <= block_b:
        tb = _round_up(B, 8)
        b_pad = tb
    else:
        tb = block_b
        b_pad = _round_up(B, tb)

    # Pad batch rows with zeros; pad fc3 output columns with zeros
    # (tanh(0) = 0 in the padded lanes, sliced off below).
    state_p = jnp.zeros((b_pad, state_dim), jnp.float32).at[:B].set(
        state.astype(jnp.float32))
    w1 = params["w1"].astype(jnp.bfloat16)
    w2 = params["w2"].astype(jnp.bfloat16)
    w3 = jnp.zeros((h2_dim, action_pad), jnp.bfloat16).at[:, :action_dim].set(
        params["w3"].astype(jnp.bfloat16))
    b1 = params["b1"].astype(jnp.float32)
    b2 = params["b2"].astype(jnp.float32)
    b3 = jnp.zeros((1, action_pad), jnp.float32).at[:, :action_dim].set(
        params["b3"].astype(jnp.float32))
    scale = jnp.asarray(max_action, dtype=jnp.float32).reshape(1, 1)

    grid = (b_pad // tb,)

    flops = 2 * b_pad * (state_dim * h1_dim + h1_dim * h2_dim + h2_dim * action_pad)
    bytes_accessed = (
        2 * (state_dim * h1_dim + h1_dim * h2_dim + h2_dim * action_pad)  # bf16 weights
        + 4 * (h1_dim + h2_dim + action_pad)                              # f32 biases
        + 4 * b_pad * state_dim                                           # state in
        + 4 * b_pad * action_pad                                          # out
        + 4)                                                              # scalar
    cost = pl.CostEstimate(flops=flops,
                           transcendentals=b_pad * action_pad,
                           bytes_accessed=bytes_accessed)

    out = pl.pallas_call(
        _actor_kernel,
        out_shape=jax.ShapeDtypeStruct((b_pad, action_pad), jnp.float32),
        grid=grid,
        in_specs=[
            pl.BlockSpec(memory_space=pltpu.MemorySpace.SMEM),        # max_action
            pl.BlockSpec((tb, state_dim), lambda i: (i, 0)),          # state tile
            pl.BlockSpec((state_dim, h1_dim), lambda i: (0, 0)),      # w1 (resident)
            pl.BlockSpec((1, h1_dim), lambda i: (0, 0)),              # b1
            pl.BlockSpec((h1_dim, h2_dim), lambda i: (0, 0)),         # w2 (resident)
            pl.BlockSpec((1, h2_dim), lambda i: (0, 0)),              # b2
            pl.BlockSpec((h2_dim, action_pad), lambda i: (0, 0)),     # w3 (resident)
            pl.BlockSpec((1, action_pad), lambda i: (0, 0)),          # b3
        ],
        out_specs=pl.BlockSpec((tb, action_pad), lambda i: (i, 0)),
        compiler_params=pltpu.CompilerParams(
            dimension_semantics=("parallel",)),
        cost_estimate=cost,
    )(scale, state_p, w1, b1, w2, b2, w3, b3)

    return out[:B, :action_dim]


def init_actor_params(key, state_dim, action_dim):
    """Deterministic init mimicking PyTorch nn.Linear default U(-1/sqrt(fan_in), +1/sqrt(fan_in))."""
    dims = [(state_dim, 1024), (1024, 512), (512, action_dim)]
    params = {}
    keys = jax.random.split(key, 2 * len(dims))
    for idx, (fan_in, fan_out) in enumerate(dims):
        bound = 1.0 / math.sqrt(fan_in)
        w = jax.random.uniform(keys[2 * idx], (fan_in, fan_out),
                               minval=-bound, maxval=bound, dtype=jnp.float32)
        b = jax.random.uniform(keys[2 * idx + 1], (1, fan_out),
                               minval=-bound, maxval=bound, dtype=jnp.float32)
        params[f"w{idx + 1}"] = w
        params[f"b{idx + 1}"] = b
    return params


def actor_reference_f32(state, params, max_action):
    """Pure-JAX f32 reference (original module semantics)."""
    h1 = jnp.maximum(state @ params["w1"] + params["b1"], 0.0)
    h2 = jnp.maximum(h1 @ params["w2"] + params["b2"], 0.0)
    return max_action * jnp.tanh(h2 @ params["w3"] + params["b3"])


def actor_reference_bf16(state, params, max_action):
    """Pure-JAX reference using the same bf16 weight streaming as the kernel."""
    w1 = params["w1"].astype(jnp.bfloat16)
    w2 = params["w2"].astype(jnp.bfloat16)
    w3 = params["w3"].astype(jnp.bfloat16)
    x = state.astype(jnp.bfloat16)
    h1 = jnp.maximum(
        jnp.dot(x, w1, preferred_element_type=jnp.float32) + params["b1"], 0.0
    ).astype(jnp.bfloat16)
    h2 = jnp.maximum(
        jnp.dot(h1, w2, preferred_element_type=jnp.float32) + params["b2"], 0.0
    ).astype(jnp.bfloat16)
    h3 = jnp.dot(h2, w3, preferred_element_type=jnp.float32) + params["b3"]
    return max_action * jnp.tanh(h3)


if __name__ == "__main__":
    batch = 2
    state_dim = 32
    action_dim = 8
    max_action = 2.0

    key = jax.random.PRNGKey(0)
    k_state, k_params = jax.random.split(key)

    state = jax.random.normal(k_state, (batch, state_dim), dtype=jnp.float32)
    params = init_actor_params(k_params, state_dim, action_dim)

    out = jax.block_until_ready(actor_forward(state, params, max_action))
    assert out.shape == (batch, action_dim)

    # Check against a reference that uses the same bf16 weight streaming
    # (the bf16 cast is the only intentional numerics change vs. pure f32).
    ref = actor_reference_bf16(state, params, max_action)
    assert jnp.allclose(out, ref, atol=2e-3, rtol=2e-3), "mismatch vs bf16 reference"

    print("KERNEL_OK")
</pallas_src>

<mosaic_0001>
module attributes {stable_mosaic.version = 11 : i64} {
  func.func @_actor_kernel(%arg0: i32, %arg1: memref<1x1xf32, #tpu.memory_space<smem>>, %arg2: memref<8x32xf32, #tpu.memory_space<vmem>>, %arg3: memref<32x1024xbf16, #tpu.memory_space<vmem>>, %arg4: memref<1x1024xf32, #tpu.memory_space<vmem>>, %arg5: memref<1024x512xbf16, #tpu.memory_space<vmem>>, %arg6: memref<1x512xf32, #tpu.memory_space<vmem>>, %arg7: memref<512x128xbf16, #tpu.memory_space<vmem>>, %arg8: memref<1x128xf32, #tpu.memory_space<vmem>>, %arg9: memref<8x128xf32, #tpu.memory_space<vmem>>) attributes {dimension_semantics = [#tpu.dimension_semantics<parallel>], iteration_bounds = array<i64: 1>, scalar_prefetch = 0 : i64, scratch_operands = 0 : i64, tpu.core_type = #tpu.core_type<tc>, window_params = [{transform_indices = @transform_0, window_bounds = array<i64: 1, 1>}, {transform_indices = @transform_1, window_bounds = array<i64: 8, 32>}, {pipeline_mode = #tpu.pipeline_mode<synchronous>, transform_indices = @transform_2, window_bounds = array<i64: 32, 1024>}, {pipeline_mode = #tpu.pipeline_mode<synchronous>, transform_indices = @transform_3, window_bounds = array<i64: 1, 1024>}, {pipeline_mode = #tpu.pipeline_mode<synchronous>, transform_indices = @transform_4, window_bounds = array<i64: 1024, 512>}, {pipeline_mode = #tpu.pipeline_mode<synchronous>, transform_indices = @transform_5, window_bounds = array<i64: 1, 512>}, {pipeline_mode = #tpu.pipeline_mode<synchronous>, transform_indices = @transform_6, window_bounds = array<i64: 512, 128>}, {pipeline_mode = #tpu.pipeline_mode<synchronous>, transform_indices = @transform_7, window_bounds = array<i64: 1, 128>}, {transform_indices = @transform_8, window_bounds = array<i64: 8, 128>}]} {
    %c0 = arith.constant 0 : index
    %c0_0 = arith.constant 0 : index
    %0 = vector.load %arg2[%c0, %c0_0] : memref<8x32xf32, #tpu.memory_space<vmem>>, vector<8x32xf32>
    %1 = arith.truncf %0 : vector<8x32xf32> to vector<8x32xbf16>
    %c0_1 = arith.constant 0 : index
    %c0_2 = arith.constant 0 : index
    %2 = vector.load %arg3[%c0_1, %c0_2] : memref<32x1024xbf16, #tpu.memory_space<vmem>>, vector<32x1024xbf16>
    %cst = arith.constant dense<0.000000e+00> : vector<8x1024xf32>
    %3 = tpu.matmul %1, %2, %cst {dimension_numbers = #tpu.dot_dimension_numbers<[1], [0], [0], [1], [0, 0, 1, 1], [], []>} : vector<8x32xbf16>, vector<32x1024xbf16>, vector<8x1024xf32> -> vector<8x1024xf32>
    %c0_3 = arith.constant 0 : index
    %c0_4 = arith.constant 0 : index
    %4 = vector.load %arg4[%c0_3, %c0_4] : memref<1x1024xf32, #tpu.memory_space<vmem>>, vector<1x1024xf32>
    %5 = vector.broadcast %4 : vector<1x1024xf32> to vector<8x1024xf32>
    %6 = arith.addf %3, %5 : vector<8x1024xf32>
    %cst_5 = arith.constant 0.000000e+00 : f32
    %7 = vector.broadcast %cst_5 : f32 to vector<8x1024xf32>
    %8 = arith.maximumf %6, %7 : vector<8x1024xf32>
    %9 = arith.truncf %8 : vector<8x1024xf32> to vector<8x1024xbf16>
    %c0_6 = arith.constant 0 : index
    %c0_7 = arith.constant 0 : index
    %10 = vector.load %arg5[%c0_6, %c0_7] : memref<1024x512xbf16, #tpu.memory_space<vmem>>, vector<1024x512xbf16>
    %cst_8 = arith.constant dense<0.000000e+00> : vector<8x512xf32>
    %11 = tpu.matmul %9, %10, %cst_8 {dimension_numbers = #tpu.dot_dimension_numbers<[1], [0], [0], [1], [0, 0, 1, 1], [], []>} : vector<8x1024xbf16>, vector<1024x512xbf16>, vector<8x512xf32> -> vector<8x512xf32>
    %c0_9 = arith.constant 0 : index
    %c0_10 = arith.constant 0 : index
    %12 = vector.load %arg6[%c0_9, %c0_10] : memref<1x512xf32, #tpu.memory_space<vmem>>, vector<1x512xf32>
    %13 = vector.broadcast %12 : vector<1x512xf32> to vector<8x512xf32>
    %14 = arith.addf %11, %13 : vector<8x512xf32>
    %cst_11 = arith.constant 0.000000e+00 : f32
    %15 = vector.broadcast %cst_11 : f32 to vector<8x512xf32>
    %16 = arith.maximumf %14, %15 : vector<8x512xf32>
    %17 = arith.truncf %16 : vector<8x512xf32> to vector<8x512xbf16>
    %c0_12 = arith.constant 0 : index
    %c0_13 = arith.constant 0 : index
    %18 = vector.load %arg7[%c0_12, %c0_13] : memref<512x128xbf16, #tpu.memory_space<vmem>>, vector<512x128xbf16>
    %cst_14 = arith.constant dense<0.000000e+00> : vector<8x128xf32>
    %19 = tpu.matmul %17, %18, %cst_14 {dimension_numbers = #tpu.dot_dimension_numbers<[1], [0], [0], [1], [0, 0, 1, 1], [], []>} : vector<8x512xbf16>, vector<512x128xbf16>, vector<8x128xf32> -> vector<8x128xf32>
    %c0_15 = arith.constant 0 : index
    %c0_16 = arith.constant 0 : index
    %20 = memref.load %arg1[%c0_15, %c0_16] : memref<1x1xf32, #tpu.memory_space<smem>>
    %c0_17 = arith.constant 0 : index
    %c0_18 = arith.constant 0 : index
    %21 = vector.load %arg8[%c0_17, %c0_18] : memref<1x128xf32, #tpu.memory_space<vmem>>, vector<1x128xf32>
    %22 = vector.broadcast %21 : vector<1x128xf32> to vector<8x128xf32>
    %23 = arith.addf %19, %22 : vector<8x128xf32>
    %24 = math.tanh %23 : vector<8x128xf32>
    %25 = vector.broadcast %20 : f32 to vector<8x128xf32>
    %26 = arith.mulf %25, %24 : vector<8x128xf32>
    %c0_19 = arith.constant 0 : index
    %c0_20 = arith.constant 0 : index
    %27 = vector.load %arg9[%c0_19, %c0_20] : memref<8x128xf32, #tpu.memory_space<vmem>>, vector<8x128xf32>
    tpu.vector_store %arg9[%c0_19, %c0_20], %26 {strides = array<i32>} : memref<8x128xf32, #tpu.memory_space<vmem>>, vector<8x128xf32>,
    return
  }
  func.func @transform_0(%arg0: i32) -> (i32, i32) {
    %c0_i32 = arith.constant 0 : i32
    %c0_i32_0 = arith.constant 0 : i32
    %c0_i32_1 = arith.constant 0 : i32
    return %c0_i32, %c0_i32_0 : i32, i32
  }
  func.func @transform_1(%arg0: i32) -> (i32, i32) {
    %c0_i32 = arith.constant 0 : i32
    %c0_i32_0 = arith.constant 0 : i32
    return %arg0, %c0_i32 : i32, i32
  }
  func.func @transform_2(%arg0: i32) -> (i32, i32) {
    %c0_i32 = arith.constant 0 : i32
    %c0_i32_0 = arith.constant 0 : i32
    %c0_i32_1 = arith.constant 0 : i32
    return %c0_i32, %c0_i32_0 : i32, i32
  }
  func.func @transform_3(%arg0: i32) -> (i32, i32) {
    %c0_i32 = arith.constant 0 : i32
    %c0_i32_0 = arith.constant 0 : i32
    %c0_i32_1 = arith.constant 0 : i32
    return %c0_i32, %c0_i32_0 : i32, i32
  }
  func.func @transform_4(%arg0: i32) -> (i32, i32) {
    %c0_i32 = arith.constant 0 : i32
    %c0_i32_0 = arith.constant 0 : i32
    %c0_i32_1 = arith.constant 0 : i32
    return %c0_i32, %c0_i32_0 : i32, i32
  }
  func.func @transform_5(%arg0: i32) -> (i32, i32) {
    %c0_i32 = arith.constant 0 : i32
    %c0_i32_0 = arith.constant 0 : i32
    %c0_i32_1 = arith.constant 0 : i32
    return %c0_i32, %c0_i32_0 : i32, i32
  }
  func.func @transform_6(%arg0: i32) -> (i32, i32) {
    %c0_i32 = arith.constant 0 : i32
    %c0_i32_0 = arith.constant 0 : i32
    %c0_i32_1 = arith.constant 0 : i32
    return %c0_i32, %c0_i32_0 : i32, i32
  }
  func.func @transform_7(%arg0: i32) -> (i32, i32) {
    %c0_i32 = arith.constant 0 : i32
    %c0_i32_0 = arith.constant 0 : i32
    %c0_i32_1 = arith.constant 0 : i32
    return %c0_i32, %c0_i32_0 : i32, i32
  }
  func.func @transform_8(%arg0: i32) -> (i32, i32) {
    %c0_i32 = arith.constant 0 : i32
    %c0_i32_0 = arith.constant 0 : i32
    return %arg0, %c0_i32 : i32, i32
  }
}

</mosaic_0001>

<llo_original>
// kernel: tpu_custom_call.1
$region0: #{tpu_custom_call.1}
  #allocation0 [shape = 'u32[]', space=smem, size = 0x4, offset = 0x4, fixed_abs, tag = 'smem constant byte address 0x4 - core index']
  #allocation1 [shape = 'u32[144,128]{1,0:T(1,128)}', space=vmem, size = 0x12000, scoped, tag = 'internal scratch']
  #allocation2 [shape = 'f32[1,1]{1,0:T(1,128)S(6)}', space=smem, size = 0x200, scoped, tag = 'scoped memory for tpu_custom_call.1']
  %s0 = inlined_call_operand.<no memory space> [shape: f32[1,1], index: 0, kind: input, shape index: {}]
  %s1 = inlined_call_operand.hbm [shape: f32[8,32], index: 1, kind: input, shape index: {}]
  %s2 = inlined_call_operand.hbm [shape: bf16[32,1024], index: 2, kind: input, shape index: {}]
  %s3 = inlined_call_operand.vmem [shape: f32[1,1024], index: 3, kind: input, shape index: {}]
  %s4 = inlined_call_operand.hbm [shape: bf16[1024,512], index: 4, kind: input, shape index: {}]
  %s5 = inlined_call_operand.vmem [shape: f32[1,512], index: 5, kind: input, shape index: {}]
  %s6 = inlined_call_operand.hbm [shape: bf16[512,128], index: 6, kind: input, shape index: {}]
  %s7 = inlined_call_operand.vmem [shape: f32[1,128], index: 7, kind: input, shape index: {}]
  %s8 = inlined_call_operand.hbm [shape: f32[8,128], index: 8, kind: output, shape index: {}]
  %s9 = sld [smem:[#allocation0]]
  $region58: #{tpu_custom_call.1} parent=0
    _
  %s11 = ssub.s32 1, %s9
  %s12 = scalar_select 0, %s11, %s9
  %13 = sst [smem:[#allocation2]] %s0
  $region1: #{tpu_custom_call.1} parent=0
    #allocation3 [shape = 'u8[4096]{0}', space=vmem, size = 0x1000, scoped, tag = 'input window, operand 1, single buffered']
    #allocation4 [shape = 's32[1]{0}', space=sflag, size = 0x4, scoped, tag = 'scoped memory for tpu_custom_call.1']
    #allocation5 [shape = 's32[1]{0}', space=sflag, size = 0x4, scoped, tag = 'scoped memory for tpu_custom_call.1']
    #allocation6 [shape = 'u8[65536]{0}', space=vmem, size = 0x10000, scoped, tag = 'input window, operand 2, single buffered']
    #allocation7 [shape = 's32[1]{0}', space=sflag, size = 0x4, scoped, tag = 'scoped memory for tpu_custom_call.1']
    #allocation8 [shape = 'u8[1048576]{0}', space=vmem, size = 0x100000, scoped, tag = 'input window, operand 4, single buffered']
    #allocation9 [shape = 'u8[131072]{0}', space=vmem, size = 0x20000, scoped, tag = 'input window, operand 6, single buffered']
    #allocation10 [shape = 's32[1]{0}', space=sflag, size = 0x4, scoped, tag = 'scoped memory for tpu_custom_call.1']
    #allocation11 [shape = 'u8[4096]{0}', space=vmem, size = 0x1000, scoped, tag = 'output window, operand 0, single buffered']
    %14 = vsyncpa [#allocation4], 0
    %15 = vsyncpa [#allocation7], 0
    %16 = vsyncpa [#allocation10], 0
    %17 = vsyncpa [#allocation5], 0
    // Predicated region
    $region2: #{tpu_custom_call.1} parent=1 // pred_check
      _
    $region3: #{tpu_custom_call.1} parent=1 // pred_check_branch
      %19 = sbr.rel (0) target = $region5
    $region4: #{tpu_custom_call.1} parent=1 // pred_region
      _
    $region5: #{tpu_custom_call.1} parent=1 // pred_fallthru
      _
    // Predicated region
    $region6: #{tpu_custom_call.1} parent=1 // pred_check
      _
    $region7: #{tpu_custom_call.1} parent=1 // pred_check_branch
      %21 = sbr.rel (0) target = $region9
    $region8: #{tpu_custom_call.1} parent=1 // pred_region
      %s23 = ssub.s32 128, 128
      %24 = vsyncadd [#allocation4], %s23
      %s26 = sshll.u32 [#allocation3], 4
      %s27 = int_to_ptr.vmem [resolvable:$true] %s26
      %29 = dma.hbm_to_vmem [thread:$0]  %s1, 128, %s27, [#allocation4]
    $region9: #{tpu_custom_call.1} parent=1 // pred_fallthru
      _
    // Predicated region
    $region10: #{tpu_custom_call.1} parent=1 // pred_check
      _
    $region11: #{tpu_custom_call.1} parent=1 // pred_check_branch
      %31 = sbr.rel (0) target = $region13
    $region12: #{tpu_custom_call.1} parent=1 // pred_region
      %s33 = ssub.s32 2048, 2048
      %34 = vsyncadd [#allocation7], %s33
      %s35 = sshll.u32 [#allocation6], 4
      %s36 = int_to_ptr.vmem [resolvable:$true] %s35
      %41 = dma.hbm_to_vmem [thread:$0]  %s2, 2048, %s36, [#allocation7], 512, 512, 32
    $region13: #{tpu_custom_call.1} parent=1 // pred_fallthru
      _
    // Predicated region
    $region14: #{tpu_custom_call.1} parent=1 // pred_check
      _
    $region15: #{tpu_custom_call.1} parent=1 // pred_check_branch
      %43 = sbr.rel (0) target = $region17
    $region16: #{tpu_custom_call.1} parent=1 // pred_region
      _
    $region17: #{tpu_custom_call.1} parent=1 // pred_fallthru
      _
    // Predicated region
    $region18: #{tpu_custom_call.1} parent=1 // pred_check
      _
    $region19: #{tpu_custom_call.1} parent=1 // pred_check_branch
      %45 = sbr.rel (0) target = $region21
    $region20: #{tpu_custom_call.1} parent=1 // pred_region
      %s47 = ssub.s32 32768, 32768
      %48 = vsyncadd [#allocation7], %s47
      %s49 = sshll.u32 [#allocation8], 4
      %s50 = int_to_ptr.vmem [resolvable:$true] %s49
      %55 = dma.hbm_to_vmem [thread:$0]  %s4, 32768, %s50, [#allocation7], 256, 256, 16
    $region21: #{tpu_custom_call.1} parent=1 // pred_fallthru
      _
    // Predicated region
    $region22: #{tpu_custom_call.1} parent=1 // pred_check
      _
    $region23: #{tpu_custom_call.1} parent=1 // pred_check_branch
      %57 = sbr.rel (0) target = $region25
    $region24: #{tpu_custom_call.1} parent=1 // pred_region
      _
    $region25: #{tpu_custom_call.1} parent=1 // pred_fallthru
      _
    // Predicated region
    $region26: #{tpu_custom_call.1} parent=1 // pred_check
      _
    $region27: #{tpu_custom_call.1} parent=1 // pred_check_branch
      %59 = sbr.rel (0) target = $region29
    $region28: #{tpu_custom_call.1} parent=1 // pred_region
      %s61 = ssub.s32 4096, 4096
      %62 = vsyncadd [#allocation10], %s61
      %s63 = sshll.u32 [#allocation9], 4
      %s64 = int_to_ptr.vmem [resolvable:$true] %s63
      %69 = dma.hbm_to_vmem [thread:$0]  %s6, 4096, %s64, [#allocation10], 64, 64, 4
    $region29: #{tpu_custom_call.1} parent=1 // pred_fallthru
      _
    // Predicated region
    $region30: #{tpu_custom_call.1} parent=1 // pred_check
      _
    $region31: #{tpu_custom_call.1} parent=1 // pred_check_branch
      %71 = sbr.rel (0) target = $region33
    $region32: #{tpu_custom_call.1} parent=1 // pred_region
      _
    $region33: #{tpu_custom_call.1} parent=1 // pred_fallthru
      _
    // Predicated region
    $region34: #{tpu_custom_call.1} parent=1 // pred_check
      _
    $region35: #{tpu_custom_call.1} parent=1 // pred_check_branch
      %73 = sbr.rel (0) target = $region37
    $region36: #{tpu_custom_call.1} parent=1 // pred_region
      %74 = dma.done [#allocation4], 128
    $region37: #{tpu_custom_call.1} parent=1 // pred_fallthru
      _
    // Predicated region
    $region38: #{tpu_custom_call.1} parent=1 // pred_check
      _
    $region39: #{tpu_custom_call.1} parent=1 // pred_check_branch
      %76 = sbr.rel (0) target = $region41
    $region40: #{tpu_custom_call.1} parent=1 // pred_region
      %77 = dma.done [#allocation7], 2048
    $region41: #{tpu_custom_call.1} parent=1 // pred_fallthru
      _
    // Predicated region
    $region42: #{tpu_custom_call.1} parent=1 // pred_check
      _
    $region43: #{tpu_custom_call.1} parent=1 // pred_check_branch
      %79 = sbr.rel (0) target = $region45
    $region44: #{tpu_custom_call.1} parent=1 // pred_region
      %80 = dma.done [#allocation7], 32768
    $region45: #{tpu_custom_call.1} parent=1 // pred_fallthru
      _
    // Predicated region
    $region46: #{tpu_custom_call.1} parent=1 // pred_check
      _
    $region47: #{tpu_custom_call.1} parent=1 // pred_check_branch
      %82 = sbr.rel (0) target = $region49
    $region48: #{tpu_custom_call.1} parent=1 // pred_region
      %83 = dma.done [#allocation10], 4096
    $region49: #{tpu_custom_call.1} parent=1 // pred_fallthru
      _
    %v85 = vld [vmem:[#allocation3] sm:$0xff]
    %v86 = vpack.c.bf16 %v85, %v85
    %v87 = vld [vmem:[#allocation6] sm:$0xff]
    %v88 = vld [vmem:[#allocation6 + $0x8] sm:$0xff]
    %v89 = vld [vmem:[#allocation6 + $0x10] sm:$0xff]
    %v90 = vld [vmem:[#allocation6 + $0x18] sm:$0xff]
    %v91 = vld [vmem:[#allocation6 + $0x20] sm:$0xff]
    %v92 = vld [vmem:[#allocation6 + $0x28] sm:$0xff]
    %v93 = vld [vmem:[#allocation6 + $0x30] sm:$0xff]
    %v94 = vld [vmem:[#allocation6 + $0x38] sm:$0xff]
    %v95 = vld [vmem:[#allocation6 + $0x40] sm:$0xff]
    %v96 = vld [vmem:[#allocation6 + $0x48] sm:$0xff]
    %v97 = vld [vmem:[#allocation6 + $0x50] sm:$0xff]
    %v98 = vld [vmem:[#allocation6 + $0x58] sm:$0xff]
    %v99 = vld [vmem:[#allocation6 + $0x60] sm:$0xff]
    %v100 = vld [vmem:[#allocation6 + $0x68] sm:$0xff]
    %v101 = vld [vmem:[#allocation6 + $0x70] sm:$0xff]
    %v102 = vld [vmem:[#allocation6 + $0x78] sm:$0xff]
    %v103 = vld [vmem:[%s3] sm:$0xff]
    %v105 = vlaneseq
    %v106 = vshrl.u32 %v105, 7
    %v107 = vsub.s32 0, %v106
    %v108 = vrot.slane %v103, %v107
    %v109 = vlaneseq
    %v110 = vshrl.u32 %v109, 7
    %v111 = vsub.s32 1, %v110
    %v112 = vrot.slane %v103, %v111
    %v113 = vlaneseq
    %v114 = vshrl.u32 %v113, 7
    %v115 = vsub.s32 2, %v114
    %v116 = vrot.slane %v103, %v115
    %v117 = vlaneseq
    %v118 = vshrl.u32 %v117, 7
    %v119 = vsub.s32 3, %v118
    %v120 = vrot.slane %v103, %v119
    %v121 = vlaneseq
    %v122 = vshrl.u32 %v121, 7
    %v123 = vsub.s32 4, %v122
    %v124 = vrot.slane %v103, %v123
    %v125 = vlaneseq
    %v126 = vshrl.u32 %v125, 7
    %v127 = vsub.s32 5, %v126
    %v128 = vrot.slane %v103, %v127
    %v129 = vlaneseq
    %v130 = vshrl.u32 %v129, 7
    %v131 = vsub.s32 6, %v130
    %v132 = vrot.slane %v103, %v131
    %v133 = vlaneseq
    %v134 = vshrl.u32 %v133, 7
    %v135 = vsub.s32 7, %v134
    %v136 = vrot.slane %v103, %v135
    %v161 = vunpack.c.l.b16 %v87
    %v162 = vunpack.c.h.b16 %v87
    %v163 = vunpack.c.l.b16 %v88
    %v164 = vunpack.c.h.b16 %v88
    %v165 = vunpack.c.l.b16 %v89
    %v166 = vunpack.c.h.b16 %v89
    %v167 = vunpack.c.l.b16 %v90
    %v168 = vunpack.c.h.b16 %v90
    %v169 = vunpack.c.l.b16 %v91
    %v170 = vunpack.c.h.b16 %v91
    %v171 = vunpack.c.l.b16 %v92
    %v172 = vunpack.c.h.b16 %v92
    %v173 = vunpack.c.l.b16 %v93
    %v174 = vunpack.c.h.b16 %v93
    %v175 = vunpack.c.l.b16 %v94
    %v176 = vunpack.c.h.b16 %v94
    %v177 = vunpack.c.l.b16 %v95
    %v178 = vunpack.c.h.b16 %v95
    %v179 = vunpack.c.l.b16 %v96
    %v180 = vunpack.c.h.b16 %v96
    %v181 = vunpack.c.l.b16 %v97
    %v182 = vunpack.c.h.b16 %v97
    %v183 = vunpack.c.l.b16 %v98
    %v184 = vunpack.c.h.b16 %v98
    %v185 = vunpack.c.l.b16 %v99
    %v186 = vunpack.c.h.b16 %v99
    %v187 = vunpack.c.l.b16 %v100
    %v188 = vunpack.c.h.b16 %v100
    %v189 = vunpack.c.l.b16 %v101
    %v190 = vunpack.c.h.b16 %v101
    %v191 = vunpack.c.l.b16 %v102
    %v192 = vunpack.c.h.b16 %v102
    %v193 = vpack.c.b16 %v169, %v161
    %v194 = vpack.c.b16 %v170, %v162
    %v195 = vpack.c.b16 %v171, %v163
    %v196 = vpack.c.b16 %v172, %v164
    %v197 = vpack.c.b16 %v173, %v165
    %v198 = vpack.c.b16 %v174, %v166
    %v199 = vpack.c.b16 %v175, %v167
    %v200 = vpack.c.b16 %v176, %v168
    %v201 = vpack.c.b16 %v185, %v177
    %v202 = vpack.c.b16 %v186, %v178
    %v203 = vpack.c.b16 %v187, %v179
    %v204 = vpack.c.b16 %v188, %v180
    %v205 = vpack.c.b16 %v189, %v181
    %v206 = vpack.c.b16 %v190, %v182
    %v207 = vpack.c.b16 %v191, %v183
    %v208 = vpack.c.b16 %v192, %v184
    %vm225 = vcmask 261120
    %v227 = vsel %vm225, %v86, 0
    %229 = vmatprep.subr.bf16.mxu0 %v194
    %230 = vmatpush1.bf16.msra.mxu0 %v193
    %231 = vmatprep.subr.bf16.mxu0 %v202
    %232 = vmatpush1.bf16.msra.mxu0 %v201
    %233 = vmatprep.subr.bf16.mxu0 0
    %234 = vmatpush1.bf16.msra.mxu0 0
    %235 = vmatprep.subr.bf16.mxu0 0
    %236 = vmatpush1.bf16.msra.mxu0 0
    %237 = vmatprep.subr.bf16.mxu0 0
    %238 = vmatpush1.bf16.msra.mxu0 0
    %239 = vmatprep.subr.bf16.mxu0 0
    %240 = vmatpush1.bf16.msra.mxu0 0
    %241 = vmatprep.subr.bf16.mxu0 0
    %242 = vmatpush1.bf16.msra.mxu0 0
    %243 = vmatprep.subr.bf16.mxu0 0
    %244 = vmatpush1.bf16.msra.mxu0 0
    %245 = vmatprep.subr.bf16.mxu0 0
    %246 = vmatpush1.bf16.msra.mxu0 0
    %247 = vmatprep.subr.bf16.mxu0 0
    %248 = vmatpush1.bf16.msra.mxu0 0
    %249 = vmatprep.subr.bf16.mxu0 0
    %250 = vmatpush1.bf16.msra.mxu0 0
    %251 = vmatprep.subr.bf16.mxu0 0
    %252 = vmatpush1.bf16.msra.mxu0 0
    %253 = vmatprep.subr.bf16.mxu0 0
    %254 = vmatpush1.bf16.msra.mxu0 0
    %255 = vmatprep.subr.bf16.mxu0 0
    %256 = vmatpush1.bf16.msra.mxu0 0
    %257 = vmatprep.subr.bf16.mxu0 0
    %258 = vmatpush1.bf16.msra.mxu0 0
    %259 = vmatprep.subr.bf16.mxu0 0
    %260 = vmatpush1.bf16.msra.mxu0 0
    %261 = vmatprep.mubr.bf16.mxu0 0
    %262 = vmatmul.mubr.bf16.gmra.mrb[0].mxu0 %v227
    %v263 = vpop.f32.mrb[0].mxu0
    %v264 = vadd.f32 %v108, %v263
    %v265 = vpop.f32.mrb[0].mxu0
    %v266 = vadd.f32 %v112, %v265
    %v267 = vpop.f32.mrb[0].mxu0
    %v268 = vpop.f32.mrb[0].mxu0
    %269 = vdwg.mxu0
    %270 = vmatprep.subr.bf16.mxu0 %v196
    %271 = vmatpush1.bf16.msra.mxu0 %v195
    %272 = vmatprep.subr.bf16.mxu0 %v204
    %273 = vmatpush1.bf16.msra.mxu0 %v203
    %274 = vmatprep.subr.bf16.mxu0 0
    %275 = vmatpush1.bf16.msra.mxu0 0
    %276 = vmatprep.subr.bf16.mxu0 0
    %277 = vmatpush1.bf16.msra.mxu0 0
    %278 = vmatprep.subr.bf16.mxu0 0
    %279 = vmatpush1.bf16.msra.mxu0 0
    %280 = vmatprep.subr.bf16.mxu0 0
    %281 = vmatpush1.bf16.msra.mxu0 0
    %282 = vmatprep.subr.bf16.mxu0 0
    %283 = vmatpush1.bf16.msra.mxu0 0
    %284 = vmatprep.subr.bf16.mxu0 0
    %285 = vmatpush1.bf16.msra.mxu0 0
    %286 = vmatprep.subr.bf16.mxu0 0
    %287 = vmatpush1.bf16.msra.mxu0 0
    %288 = vmatprep.subr.bf16.mxu0 0
    %289 = vmatpush1.bf16.msra.mxu0 0
    %290 = vmatprep.subr.bf16.mxu0 0
    %291 = vmatpush1.bf16.msra.mxu0 0
    %292 = vmatprep.subr.bf16.mxu0 0
    %293 = vmatpush1.bf16.msra.mxu0 0
    %294 = vmatprep.subr.bf16.mxu0 0
    %295 = vmatpush1.bf16.msra.mxu0 0
    %296 = vmatprep.subr.bf16.mxu0 0
    %297 = vmatpush1.bf16.msra.mxu0 0
    %298 = vmatprep.subr.bf16.mxu0 0
    %299 = vmatpush1.bf16.msra.mxu0 0
    %300 = vmatprep.subr.bf16.mxu0 0
    %301 = vmatpush1.bf16.msra.mxu0 0
    %302 = vmatprep.mubr.bf16.mxu0 0
    %303 = vmatmul.mubr.bf16.gmra.mrb[0].mxu0 %v227
    %v304 = vpop.f32.mrb[0].mxu0
    %v305 = vadd.f32 %v116, %v304
    %v306 = vpop.f32.mrb[0].mxu0
    %v307 = vadd.f32 %v120, %v306
    %v308 = vpop.f32.mrb[0].mxu0
    %v309 = vpop.f32.mrb[0].mxu0
    %310 = vdwg.mxu0
    %311 = vmatprep.subr.bf16.mxu0 %v198
    %312 = vmatpush1.bf16.msra.mxu0 %v197
    %313 = vmatprep.subr.bf16.mxu0 %v206
    %314 = vmatpush1.bf16.msra.mxu0 %v205
    %315 = vmatprep.subr.bf16.mxu0 0
    %316 = vmatpush1.bf16.msra.mxu0 0
    %317 = vmatprep.subr.bf16.mxu0 0
    %318 = vmatpush1.bf16.msra.mxu0 0
    %319 = vmatprep.subr.bf16.mxu0 0
    %320 = vmatpush1.bf16.msra.mxu0 0
    %321 = vmatprep.subr.bf16.mxu0 0
    %322 = vmatpush1.bf16.msra.mxu0 0
    %323 = vmatprep.subr.bf16.mxu0 0
    %324 = vmatpush1.bf16.msra.mxu0 0
    %325 = vmatprep.subr.bf16.mxu0 0
    %326 = vmatpush1.bf16.msra.mxu0 0
    %327 = vmatprep.subr.bf16.mxu0 0
    %328 = vmatpush1.bf16.msra.mxu0 0
    %329 = vmatprep.subr.bf16.mxu0 0
    %330 = vmatpush1.bf16.msra.mxu0 0
    %331 = vmatprep.subr.bf16.mxu0 0
    %332 = vmatpush1.bf16.msra.mxu0 0
    %333 = vmatprep.subr.bf16.mxu0 0
    %334 = vmatpush1.bf16.msra.mxu0 0
    %335 = vmatprep.subr.bf16.mxu0 0
    %336 = vmatpush1.bf16.msra.mxu0 0
    %337 = vmatprep.subr.bf16.mxu0 0
    %338 = vmatpush1.bf16.msra.mxu0 0
    %339 = vmatprep.subr.bf16.mxu0 0
    %340 = vmatpush1.bf16.msra.mxu0 0
    %341 = vmatprep.subr.bf16.mxu0 0
    %342 = vmatpush1.bf16.msra.mxu0 0
    %343 = vmatprep.mubr.bf16.mxu0 0
    %344 = vmatmul.mubr.bf16.gmra.mrb[0].mxu0 %v227
    %v345 = vpop.f32.mrb[0].mxu0
    %v346 = vadd.f32 %v124, %v345
    %v347 = vpop.f32.mrb[0].mxu0
    %v348 = vadd.f32 %v128, %v347
    %v349 = vpop.f32.mrb[0].mxu0
    %v350 = vpop.f32.mrb[0].mxu0
    %351 = vdwg.mxu0
    %352 = vmatprep.subr.bf16.mxu0 %v200
    %353 = vmatpush1.bf16.msra.mxu0 %v199
    %354 = vmatprep.subr.bf16.mxu0 %v208
    %355 = vmatpush1.bf16.msra.mxu0 %v207
    %356 = vmatprep.subr.bf16.mxu0 0
    %357 = vmatpush1.bf16.msra.mxu0 0
    %358 = vmatprep.subr.bf16.mxu0 0
    %359 = vmatpush1.bf16.msra.mxu0 0
    %360 = vmatprep.subr.bf16.mxu0 0
    %361 = vmatpush1.bf16.msra.mxu0 0
    %362 = vmatprep.subr.bf16.mxu0 0
    %363 = vmatpush1.bf16.msra.mxu0 0
    %364 = vmatprep.subr.bf16.mxu0 0
    %365 = vmatpush1.bf16.msra.mxu0 0
    %366 = vmatprep.subr.bf16.mxu0 0
    %367 = vmatpush1.bf16.msra.mxu0 0
    %368 = vmatprep.subr.bf16.mxu0 0
    %369 = vmatpush1.bf16.msra.mxu0 0
    %370 = vmatprep.subr.bf16.mxu0 0
    %371 = vmatpush1.bf16.msra.mxu0 0
    %372 = vmatprep.subr.bf16.mxu0 0
    %373 = vmatpush1.bf16.msra.mxu0 0
    %374 = vmatprep.subr.bf16.mxu0 0
    %375 = vmatpush1.bf16.msra.mxu0 0
    %376 = vmatprep.subr.bf16.mxu0 0
    %377 = vmatpush1.bf16.msra.mxu0 0
    %378 = vmatprep.subr.bf16.mxu0 0
    %379 = vmatpush1.bf16.msra.mxu0 0
    %380 = vmatprep.subr.bf16.mxu0 0
    %381 = vmatpush1.bf16.msra.mxu0 0
    %382 = vmatprep.subr.bf16.mxu0 0
    %383 = vmatpush1.bf16.msra.mxu0 0
    %384 = vmatprep.mubr.bf16.mxu0 0
    %385 = vmatmul.mubr.bf16.gmra.mrb[0].mxu0 %v227
    %v386 = vpop.f32.mrb[0].mxu0
    %v387 = vadd.f32 %v132, %v386
    %v388 = vpop.f32.mrb[0].mxu0
    %v389 = vadd.f32 %v136, %v388
    %v390 = vpop.f32.mrb[0].mxu0
    %v391 = vpop.f32.mrb[0].mxu0
    %392 = vdwg.mxu0
    %v393 = vmax.f32 %v264, 0.0
    %v394 = vmax.f32 %v266, 0.0
    %v395 = vmax.f32 %v305, 0.0
    %v396 = vmax.f32 %v307, 0.0
    %v397 = vmax.f32 %v346, 0.0
    %v398 = vmax.f32 %v348, 0.0
    %v399 = vmax.f32 %v387, 0.0
    %v400 = vmax.f32 %v389, 0.0
    %v401 = vpack.c.bf16 %v393, %v393
    %v402 = vpack.c.bf16 %v394, %v394
    %v403 = vpack.c.bf16 %v395, %v395
    %v404 = vpack.c.bf16 %v396, %v396
    %v405 = vpack.c.bf16 %v397, %v397
    %v406 = vpack.c.bf16 %v398, %v398
    %v407 = vpack.c.bf16 %v399, %v399
    %v408 = vpack.c.bf16 %v400, %v400
    %v409 = vld [vmem:[#allocation8] sm:$0xff]
    %v410 = vld [vmem:[#allocation8 + $0x8] sm:$0xff]
    %v411 = vld [vmem:[#allocation8 + $0x10] sm:$0xff]
    %v412 = vld [vmem:[#allocation8 + $0x18] sm:$0xff]
    %v413 = vld [vmem:[#allocation8 + $0x20] sm:$0xff]
    %v414 = vld [vmem:[#allocation8 + $0x28] sm:$0xff]
    %v415 = vld [vmem:[#allocation8 + $0x30] sm:$0xff]
    %v416 = vld [vmem:[#allocation8 + $0x38] sm:$0xff]
    %v417 = vld [vmem:[#allocation8 + $0x40] sm:$0xff]
    %v418 = vld [vmem:[#allocation8 + $0x48] sm:$0xff]
    %v419 = vld [vmem:[#allocation8 + $0x50] sm:$0xff]
    %v420 = vld [vmem:[#allocation8 + $0x58] sm:$0xff]
    %v421 = vld [vmem:[#allocation8 + $0x60] sm:$0xff]
    %v422 = vld [vmem:[#allocation8 + $0x68] sm:$0xff]
    %v423 = vld [vmem:[#allocation8 + $0x70] sm:$0xff]
    %v424 = vld [vmem:[#allocation8 + $0x78] sm:$0xff]
    %v425 = vld [vmem:[#allocation8 + $0x80] sm:$0xff]
    %v426 = vld [vmem:[#allocation8 + $0x88] sm:$0xff]
    %v427 = vld [vmem:[#allocation8 + $0x90] sm:$0xff]
    %v428 = vld [vmem:[#allocation8 + $0x98] sm:$0xff]
    %v429 = vld [vmem:[#allocation8 + $0xa0] sm:$0xff]
    %v430 = vld [vmem:[#allocation8 + $0xa8] sm:$0xff]
    %v431 = vld [vmem:[#allocation8 + $0xb0] sm:$0xff]
    %v432 = vld [vmem:[#allocation8 + $0xb8] sm:$0xff]
    %v433 = vld [vmem:[#allocation8 + $0xc0] sm:$0xff]
    %v434 = vld [vmem:[#allocation8 + $0xc8] sm:$0xff]
    %v435 = vld [vmem:[#allocation8 + $0xd0] sm:$0xff]
    %v436 = vld [vmem:[#allocation8 + $0xd8] sm:$0xff]
    %v437 = vld [vmem:[#allocation8 + $0xe0] sm:$0xff]
    %v438 = vld [vmem:[#allocation8 + $0xe8] sm:$0xff]
    %v439 = vld [vmem:[#allocation8 + $0xf0] sm:$0xff]
    %v440 = vld [vmem:[#allocation8 + $0xf8] sm:$0xff]
    %v441 = vld [vmem:[#allocation8 + $0x100] sm:$0xff]
    %v442 = vld [vmem:[#allocation8 + $0x108] sm:$0xff]
    %v443 = vld [vmem:[#allocation8 + $0x110] sm:$0xff]
    %v444 = vld [vmem:[#allocation8 + $0x118] sm:$0xff]
    %v445 = vld [vmem:[#allocation8 + $0x120] sm:$0xff]
    %v446 = vld [vmem:[#allocation8 + $0x128] sm:$0xff]
    %v447 = vld [vmem:[#allocation8 + $0x130] sm:$0xff]
    %v448 = vld [vmem:[#allocation8 + $0x138] sm:$0xff]
    %v449 = vld [vmem:[#allocation8 + $0x140] sm:$0xff]
    %v450 = vld [vmem:[#allocation8 + $0x148] sm:$0xff]
    %v451 = vld [vmem:[#allocation8 + $0x150] sm:$0xff]
    %v452 = vld [vmem:[#allocation8 + $0x158] sm:$0xff]
    %v453 = vld [vmem:[#allocation8 + $0x160] sm:$0xff]
    %v454 = vld [vmem:[#allocation8 + $0x168] sm:$0xff]
    %v455 = vld [vmem:[#allocation8 + $0x170] sm:$0xff]
    %v456 = vld [vmem:[#allocation8 + $0x178] sm:$0xff]
    %v457 = vld [vmem:[#allocation8 + $0x180] sm:$0xff]
    %v458 = vld [vmem:[#allocation8 + $0x188] sm:$0xff]
    %v459 = vld [vmem:[#allocation8 + $0x190] sm:$0xff]
    %v460 = vld [vmem:[#allocation8 + $0x198] sm:$0xff]
    %v461 = vld [vmem:[#allocation8 + $0x1a0] sm:$0xff]
    %v462 = vld [vmem:[#allocation8 + $0x1a8] sm:$0xff]
    %v463 = vld [vmem:[#allocation8 + $0x1b0] sm:$0xff]
    %v464 = vld [vmem:[#allocation8 + $0x1b8] sm:$0xff]
    %v465 = vld [vmem:[#allocation8 + $0x1c0] sm:$0xff]
    %v466 = vld [vmem:[#allocation8 + $0x1c8] sm:$0xff]
    %v467 = vld [vmem:[#allocation8 + $0x1d0] sm:$0xff]
    %v468 = vld [vmem:[#allocation8 + $0x1d8] sm:$0xff]
    %v469 = vld [vmem:[#allocation8 + $0x1e0] sm:$0xff]
    %v470 = vld [vmem:[#allocation8 + $0x1e8] sm:$0xff]
    %v471 = vld [vmem:[#allocation8 + $0x1f0] sm:$0xff]
    %v472 = vld [vmem:[#allocation8 + $0x1f8] sm:$0xff]
    %v473 = vld [vmem:[#allocation8 + $0x200] sm:$0xff]
    %v474 = vld [vmem:[#allocation8 + $0x208] sm:$0xff]
    %v475 = vld [vmem:[#allocation8 + $0x210] sm:$0xff]
    %v476 = vld [vmem:[#allocation8 + $0x218] sm:$0xff]
    %v477 = vld [vmem:[#allocation8 + $0x220] sm:$0xff]
    %v478 = vld [vmem:[#allocation8 + $0x228] sm:$0xff]
    %v479 = vld [vmem:[#allocation8 + $0x230] sm:$0xff]
    %v480 = vld [vmem:[#allocation8 + $0x238] sm:$0xff]
    %v481 = vld [vmem:[#allocation8 + $0x240] sm:$0xff]
    %v482 = vld [vmem:[#allocation8 + $0x248] sm:$0xff]
    %v483 = vld [vmem:[#allocation8 + $0x250] sm:$0xff]
    %v484 = vld [vmem:[#allocation8 + $0x258] sm:$0xff]
    %v485 = vld [vmem:[#allocation8 + $0x260] sm:$0xff]
    %v486 = vld [vmem:[#allocation8 + $0x268] sm:$0xff]
    %v487 = vld [vmem:[#allocation8 + $0x270] sm:$0xff]
    %v488 = vld [vmem:[#allocation8 + $0x278] sm:$0xff]
    %v489 = vld [vmem:[#allocation8 + $0x280] sm:$0xff]
    %v490 = vld [vmem:[#allocation8 + $0x288] sm:$0xff]
    %v491 = vld [vmem:[#allocation8 + $0x290] sm:$0xff]
    %v492 = vld [vmem:[#allocation8 + $0x298] sm:$0xff]
    %v493 = vld [vmem:[#allocation8 + $0x2a0] sm:$0xff]
    %v494 = vld [vmem:[#allocation8 + $0x2a8] sm:$0xff]
    %v495 = vld [vmem:[#allocation8 + $0x2b0] sm:$0xff]
    %v496 = vld [vmem:[#allocation8 + $0x2b8] sm:$0xff]
    %v497 = vld [vmem:[#allocation8 + $0x2c0] sm:$0xff]
    %v498 = vld [vmem:[#allocation8 + $0x2c8] sm:$0xff]
    %v499 = vld [vmem:[#allocation8 + $0x2d0] sm:$0xff]
    %v500 = vld [vmem:[#allocation8 + $0x2d8] sm:$0xff]
    %v501 = vld [vmem:[#allocation8 + $0x2e0] sm:$0xff]
    %v502 = vld [vmem:[#allocation8 + $0x2e8] sm:$0xff]
    %v503 = vld [vmem:[#allocation8 + $0x2f0] sm:$0xff]
    %v504 = vld [vmem:[#allocation8 + $0x2f8] sm:$0xff]
    %v505 = vld [vmem:[#allocation8 + $0x300] sm:$0xff]
    %v506 = vld [vmem:[#allocation8 + $0x308] sm:$0xff]
    %v507 = vld [vmem:[#allocation8 + $0x310] sm:$0xff]
    %v508 = vld [vmem:[#allocation8 + $0x318] sm:$0xff]
    %v509 = vld [vmem:[#allocation8 + $0x320] sm:$0xff]
    %v510 = vld [vmem:[#allocation8 + $0x328] sm:$0xff]
    %v511 = vld [vmem:[#allocation8 + $0x330] sm:$0xff]
    %v512 = vld [vmem:[#allocation8 + $0x338] sm:$0xff]
    %v513 = vld [vmem:[#allocation8 + $0x340] sm:$0xff]
    %v514 = vld [vmem:[#allocation8 + $0x348] sm:$0xff]
    %v515 = vld [vmem:[#allocation8 + $0x350] sm:$0xff]
    %v516 = vld [vmem:[#allocation8 + $0x358] sm:$0xff]
    %v517 = vld [vmem:[#allocation8 + $0x360] sm:$0xff]
    %v518 = vld [vmem:[#allocation8 + $0x368] sm:$0xff]
    %v519 = vld [vmem:[#allocation8 + $0x370] sm:$0xff]
    %v520 = vld [vmem:[#allocation8 + $0x378] sm:$0xff]
    %v521 = vld [vmem:[#allocation8 + $0x380] sm:$0xff]
    %v522 = vld [vmem:[#allocation8 + $0x388] sm:$0xff]
    %v523 = vld [vmem:[#allocation8 + $0x390] sm:$0xff]
    %v524 = vld [vmem:[#allocation8 + $0x398] sm:$0xff]
    %v525 = vld [vmem:[#allocation8 + $0x3a0] sm:$0xff]
    %v526 = vld [vmem:[#allocation8 + $0x3a8] sm:$0xff]
    %v527 = vld [vmem:[#allocation8 + $0x3b0] sm:$0xff]
    %v528 = vld [vmem:[#allocation8 + $0x3b8] sm:$0xff]
    %v529 = vld [vmem:[#allocation8 + $0x3c0] sm:$0xff]
    %v530 = vld [vmem:[#allocation8 + $0x3c8] sm:$0xff]
    %v531 = vld [vmem:[#allocation8 + $0x3d0] sm:$0xff]
    %v532 = vld [vmem:[#allocation8 + $0x3d8] sm:$0xff]
    %v533 = vld [vmem:[#allocation8 + $0x3e0] sm:$0xff]
    %v534 = vld [vmem:[#allocation8 + $0x3e8] sm:$0xff]
    %v535 = vld [vmem:[#allocation8 + $0x3f0] sm:$0xff]
    %v536 = vld [vmem:[#allocation8 + $0x3f8] sm:$0xff]
    %v537 = vld [vmem:[#allocation8 + $0x400] sm:$0xff]
    %v538 = vld [vmem:[#allocation8 + $0x408] sm:$0xff]
    %v539 = vld [vmem:[#allocation8 + $0x410] sm:$0xff]
    %v540 = vld [vmem:[#allocation8 + $0x418] sm:$0xff]
    %v541 = vld [vmem:[#allocation8 + $0x420] sm:$0xff]
    %v542 = vld [vmem:[#allocation8 + $0x428] sm:$0xff]
    %v543 = vld [vmem:[#allocation8 + $0x430] sm:$0xff]
    %v544 = vld [vmem:[#allocation8 + $0x438] sm:$0xff]
    %v545 = vld [vmem:[#allocation8 + $0x440] sm:$0xff]
    %v546 = vld [vmem:[#allocation8 + $0x448] sm:$0xff]
    %v547 = vld [vmem:[#allocation8 + $0x450] sm:$0xff]
    %v548 = vld [vmem:[#allocation8 + $0x458] sm:$0xff]
    %v549 = vld [vmem:[#allocation8 + $0x460] sm:$0xff]
    %v550 = vld [vmem:[#allocation8 + $0x468] sm:$0xff]
    %v551 = vld [vmem:[#allocation8 + $0x470] sm:$0xff]
    %v552 = vld [vmem:[#allocation8 + $0x478] sm:$0xff]
    %v553 = vld [vmem:[#allocation8 + $0x480] sm:$0xff]
    %v554 = vld [vmem:[#allocation8 + $0x488] sm:$0xff]
    %v555 = vld [vmem:[#allocation8 + $0x490] sm:$0xff]
    %v556 = vld [vmem:[#allocation8 + $0x498] sm:$0xff]
    %v557 = vld [vmem:[#allocation8 + $0x4a0] sm:$0xff]
    %v558 = vld [vmem:[#allocation8 + $0x4a8] sm:$0xff]
    %v559 = vld [vmem:[#allocation8 + $0x4b0] sm:$0xff]
    %v560 = vld [vmem:[#allocation8 + $0x4b8] sm:$0xff]
    %v561 = vld [vmem:[#allocation8 + $0x4c0] sm:$0xff]
    %v562 = vld [vmem:[#allocation8 + $0x4c8] sm:$0xff]
    %v563 = vld [vmem:[#allocation8 + $0x4d0] sm:$0xff]
    %v564 = vld [vmem:[#allocation8 + $0x4d8] sm:$0xff]
    %v565 = vld [vmem:[#allocation8 + $0x4e0] sm:$0xff]
    %v566 = vld [vmem:[#allocation8 + $0x4e8] sm:$0xff]
    %v567 = vld [vmem:[#allocation8 + $0x4f0] sm:$0xff]
    %v568 = vld [vmem:[#allocation8 + $0x4f8] sm:$0xff]
    %v569 = vld [vmem:[#allocation8 + $0x500] sm:$0xff]
    %v570 = vld [vmem:[#allocation8 + $0x508] sm:$0xff]
    %v571 = vld [vmem:[#allocation8 + $0x510] sm:$0xff]
    %v572 = vld [vmem:[#allocation8 + $0x518] sm:$0xff]
    %v573 = vld [vmem:[#allocation8 + $0x520] sm:$0xff]
    %v574 = vld [vmem:[#allocation8 + $0x528] sm:$0xff]
    %v575 = vld [vmem:[#allocation8 + $0x530] sm:$0xff]
    %v576 = vld [vmem:[#allocation8 + $0x538] sm:$0xff]
    %v577 = vld [vmem:[#allocation8 + $0x540] sm:$0xff]
    %v578 = vld [vmem:[#allocation8 + $0x548] sm:$0xff]
    %v579 = vld [vmem:[#allocation8 + $0x550] sm:$0xff]
    %v580 = vld [vmem:[#allocation8 + $0x558] sm:$0xff]
    %v581 = vld [vmem:[#allocation8 + $0x560] sm:$0xff]
    %v582 = vld [vmem:[#allocation8 + $0x568] sm:$0xff]
    %v583 = vld [vmem:[#allocation8 + $0x570] sm:$0xff]
    %v584 = vld [vmem:[#allocation8 + $0x578] sm:$0xff]
    %v585 = vld [vmem:[#allocation8 + $0x580] sm:$0xff]
    %v586 = vld [vmem:[#allocation8 + $0x588] sm:$0xff]
    %v587 = vld [vmem:[#allocation8 + $0x590] sm:$0xff]
    %v588 = vld [vmem:[#allocation8 + $0x598] sm:$0xff]
    %v589 = vld [vmem:[#allocation8 + $0x5a0] sm:$0xff]
    %v590 = vld [vmem:[#allocation8 + $0x5a8] sm:$0xff]
    %v591 = vld [vmem:[#allocation8 + $0x5b0] sm:$0xff]
    %v592 = vld [vmem:[#allocation8 + $0x5b8] sm:$0xff]
    %v593 = vld [vmem:[#allocation8 + $0x5c0] sm:$0xff]
    %v594 = vld [vmem:[#allocation8 + $0x5c8] sm:$0xff]
    %v595 = vld [vmem:[#allocation8 + $0x5d0] sm:$0xff]
    %v596 = vld [vmem:[#allocation8 + $0x5d8] sm:$0xff]
    %v597 = vld [vmem:[#allocation8 + $0x5e0] sm:$0xff]
    %v598 = vld [vmem:[#allocation8 + $0x5e8] sm:$0xff]
    %v599 = vld [vmem:[#allocation8 + $0x5f0] sm:$0xff]
    %v600 = vld [vmem:[#allocation8 + $0x5f8] sm:$0xff]
    %v601 = vld [vmem:[#allocation8 + $0x600] sm:$0xff]
    %v602 = vld [vmem:[#allocation8 + $0x608] sm:$0xff]
    %v603 = vld [vmem:[#allocation8 + $0x610] sm:$0xff]
    %v604 = vld [vmem:[#allocation8 + $0x618] sm:$0xff]
    %v605 = vld [vmem:[#allocation8 + $0x620] sm:$0xff]
    %v606 = vld [vmem:[#allocation8 + $0x628] sm:$0xff]
    %v607 = vld [vmem:[#allocation8 + $0x630] sm:$0xff]
    %v608 = vld [vmem:[#allocation8 + $0x638] sm:$0xff]
    %v609 = vld [vmem:[#allocation8 + $0x640] sm:$0xff]
    %v610 = vld [vmem:[#allocation8 + $0x648] sm:$0xff]
    %v611 = vld [vmem:[#allocation8 + $0x650] sm:$0xff]
    %v612 = vld [vmem:[#allocation8 + $0x658] sm:$0xff]
    %v613 = vld [vmem:[#allocation8 + $0x660] sm:$0xff]
    %v614 = vld [vmem:[#allocation8 + $0x668] sm:$0xff]
    %v615 = vld [vmem:[#allocation8 + $0x670] sm:$0xff]
    %v616 = vld [vmem:[#allocation8 + $0x678] sm:$0xff]
    %v617 = vld [vmem:[#allocation8 + $0x680] sm:$0xff]
    %v618 = vld [vmem:[#allocation8 + $0x688] sm:$0xff]
    %v619 = vld [vmem:[#allocation8 + $0x690] sm:$0xff]
    %v620 = vld [vmem:[#allocation8 + $0x698] sm:$0xff]
    %v621 = vld [vmem:[#allocation8 + $0x6a0] sm:$0xff]
    %v622 = vld [vmem:[#allocation8 + $0x6a8] sm:$0xff]
    %v623 = vld [vmem:[#allocation8 + $0x6b0] sm:$0xff]
    %v624 = vld [vmem:[#allocation8 + $0x6b8] sm:$0xff]
    %v625 = vld [vmem:[#allocation8 + $0x6c0] sm:$0xff]
    %v626 = vld [vmem:[#allocation8 + $0x6c8] sm:$0xff]
    %v627 = vld [vmem:[#allocation8 + $0x6d0] sm:$0xff]
    %v628 = vld [vmem:[#allocation8 + $0x6d8] sm:$0xff]
    %v629 = vld [vmem:[#allocation8 + $0x6e0] sm:$0xff]
    %v630 = vld [vmem:[#allocation8 + $0x6e8] sm:$0xff]
    %v631 = vld [vmem:[#allocation8 + $0x6f0] sm:$0xff]
    %v632 = vld [vmem:[#allocation8 + $0x6f8] sm:$0xff]
    %v633 = vld [vmem:[#allocation8 + $0x700] sm:$0xff]
    %v634 = vld [vmem:[#allocation8 + $0x708] sm:$0xff]
    %v635 = vld [vmem:[#allocation8 + $0x710] sm:$0xff]
    %v636 = vld [vmem:[#allocation8 + $0x718] sm:$0xff]
    %v637 = vld [vmem:[#allocation8 + $0x720] sm:$0xff]
    %v638 = vld [vmem:[#allocation8 + $0x728] sm:$0xff]
    %v639 = vld [vmem:[#allocation8 + $0x730] sm:$0xff]
    %v640 = vld [vmem:[#allocation8 + $0x738] sm:$0xff]
    %v641 = vld [vmem:[#allocation8 + $0x740] sm:$0xff]
    %v642 = vld [vmem:[#allocation8 + $0x748] sm:$0xff]
    %v643 = vld [vmem:[#allocation8 + $0x750] sm:$0xff]
    %v644 = vld [vmem:[#allocation8 + $0x758] sm:$0xff]
    %v645 = vld [vmem:[#allocation8 + $0x760] sm:$0xff]
    %v646 = vld [vmem:[#allocation8 + $0x768] sm:$0xff]
    %v647 = vld [vmem:[#allocation8 + $0x770] sm:$0xff]
    %v648 = vld [vmem:[#allocation8 + $0x778] sm:$0xff]
    %v649 = vld [vmem:[#allocation8 + $0x780] sm:$0xff]
    %v650 = vld [vmem:[#allocation8 + $0x788] sm:$0xff]
    %v651 = vld [vmem:[#allocation8 + $0x790] sm:$0xff]
    %v652 = vld [vmem:[#allocation8 + $0x798] sm:$0xff]
    %v653 = vld [vmem:[#allocation8 + $0x7a0] sm:$0xff]
    %v654 = vld [vmem:[#allocation8 + $0x7a8] sm:$0xff]
    %v655 = vld [vmem:[#allocation8 + $0x7b0] sm:$0xff]
    %v656 = vld [vmem:[#allocation8 + $0x7b8] sm:$0xff]
    %v657 = vld [vmem:[#allocation8 + $0x7c0] sm:$0xff]
    %v658 = vld [vmem:[#allocation8 + $0x7c8] sm:$0xff]
    %v659 = vld [vmem:[#allocation8 + $0x7d0] sm:$0xff]
    %v660 = vld [vmem:[#allocation8 + $0x7d8] sm:$0xff]
    %v661 = vld [vmem:[#allocation8 + $0x7e0] sm:$0xff]
    %v662 = vld [vmem:[#allocation8 + $0x7e8] sm:$0xff]
    %v663 = vld [vmem:[#allocation8 + $0x7f0] sm:$0xff]
    %v664 = vld [vmem:[#allocation8 + $0x7f8] sm:$0xff]
    %v665 = vld [vmem:[%s5] sm:$0xf]
    %v667 = vlaneseq
    %v668 = vshrl.u32 %v667, 7
    %v669 = vsub.s32 0, %v668
    %v670 = vrot.slane %v665, %v669
    %v671 = vlaneseq
    %v672 = vshrl.u32 %v671, 7
    %v673 = vsub.s32 1, %v672
    %v674 = vrot.slane %v665, %v673
    %v675 = vlaneseq
    %v676 = vshrl.u32 %v675, 7
    %v677 = vsub.s32 2, %v676
    %v678 = vrot.slane %v665, %v677
    %v679 = vlaneseq
    %v680 = vshrl.u32 %v679, 7
    %v681 = vsub.s32 3, %v680
    %v682 = vrot.slane %v665, %v681
    %v943 = vunpack.c.l.b16 %v409
    %v944 = vunpack.c.h.b16 %v409
    %v945 = vunpack.c.l.b16 %v410
    %v946 = vunpack.c.h.b16 %v410
    %v947 = vunpack.c.l.b16 %v411
    %v948 = vunpack.c.h.b16 %v411
    %v949 = vunpack.c.l.b16 %v412
    %v950 = vunpack.c.h.b16 %v412
    %v951 = vunpack.c.l.b16 %v413
    %v952 = vunpack.c.h.b16 %v413
    %v953 = vunpack.c.l.b16 %v414
    %v954 = vunpack.c.h.b16 %v414
    %v955 = vunpack.c.l.b16 %v415
    %v956 = vunpack.c.h.b16 %v415
    %v957 = vunpack.c.l.b16 %v416
    %v958 = vunpack.c.h.b16 %v416
    %v959 = vunpack.c.l.b16 %v417
    %v960 = vunpack.c.h.b16 %v417
    %v961 = vunpack.c.l.b16 %v418
    %v962 = vunpack.c.h.b16 %v418
    %v963 = vunpack.c.l.b16 %v419
    %v964 = vunpack.c.h.b16 %v419
    %v965 = vunpack.c.l.b16 %v420
    %v966 = vunpack.c.h.b16 %v420
    %v967 = vunpack.c.l.b16 %v421
    %v968 = vunpack.c.h.b16 %v421
    %v969 = vunpack.c.l.b16 %v422
    %v970 = vunpack.c.h.b16 %v422
    %v971 = vunpack.c.l.b16 %v423
    %v972 = vunpack.c.h.b16 %v423
    %v973 = vunpack.c.l.b16 %v424
    %v974 = vunpack.c.h.b16 %v424
    %v975 = vunpack.c.l.b16 %v425
    %v976 = vunpack.c.h.b16 %v425
    %v977 = vunpack.c.l.b16 %v426
    %v978 = vunpack.c.h.b16 %v426
    %v979 = vunpack.c.l.b16 %v427
    %v980 = vunpack.c.h.b16 %v427
    %v981 = vunpack.c.l.b16 %v428
    %v982 = vunpack.c.h.b16 %v428
    %v983 = vunpack.c.l.b16 %v429
    %v984 = vunpack.c.h.b16 %v429
    %v985 = vunpack.c.l.b16 %v430
    %v986 = vunpack.c.h.b16 %v430
    %v987 = vunpack.c.l.b16 %v431
    %v988 = vunpack.c.h.b16 %v431
    %v989 = vunpack.c.l.b16 %v432
    %v990 = vunpack.c.h.b16 %v432
    %v991 = vunpack.c.l.b16 %v433
    %v992 = vunpack.c.h.b16 %v433
    %v993 = vunpack.c.l.b16 %v434
    %v994 = vunpack.c.h.b16 %v434
    %v995 = vunpack.c.l.b16 %v435
    %v996 = vunpack.c.h.b16 %v435
    %v997 = vunpack.c.l.b16 %v436
    %v998 = vunpack.c.h.b16 %v436
    %v999 = vunpack.c.l.b16 %v437
    %v1000 = vunpack.c.h.b16 %v437
    %v1001 = vunpack.c.l.b16 %v438
    %v1002 = vunpack.c.h.b16 %v438
    %v1003 = vunpack.c.l.b16 %v439
    %v1004 = vunpack.c.h.b16 %v439
    %v1005 = vunpack.c.l.b16 %v440
    %v1006 = vunpack.c.h.b16 %v440
    %v1007 = vunpack.c.l.b16 %v441
    %v1008 = vunpack.c.h.b16 %v441
    %v1009 = vunpack.c.l.b16 %v442
    %v1010 = vunpack.c.h.b16 %v442
    %v1011 = vunpack.c.l.b16 %v443
    %v1012 = vunpack.c.h.b16 %v443
    %v1013 = vunpack.c.l.b16 %v444
    %v1014 = vunpack.c.h.b16 %v444
    %v1015 = vunpack.c.l.b16 %v445
    %v1016 = vunpack.c.h.b16 %v445
    %v1017 = vunpack.c.l.b16 %v446
    %v1018 = vunpack.c.h.b16 %v446
    %v1019 = vunpack.c.l.b16 %v447
    %v1020 = vunpack.c.h.b16 %v447
    %v1021 = vunpack.c.l.b16 %v448
    %v1022 = vunpack.c.h.b16 %v448
    %v1023 = vunpack.c.l.b16 %v449
    %v1024 = vunpack.c.h.b16 %v449
    %v1025 = vunpack.c.l.b16 %v450
    %v1026 = vunpack.c.h.b16 %v450
    %v1027 = vunpack.c.l.b16 %v451
    %v1028 = vunpack.c.h.b16 %v451
    %v1029 = vunpack.c.l.b16 %v452
    %v1030 = vunpack.c.h.b16 %v452
    %v1031 = vunpack.c.l.b16 %v453
    %v1032 = vunpack.c.h.b16 %v453
    %v1033 = vunpack.c.l.b16 %v454
    %v1034 = vunpack.c.h.b16 %v454
    %v1035 = vunpack.c.l.b16 %v455
    %v1036 = vunpack.c.h.b16 %v455
    %v1037 = vunpack.c.l.b16 %v456
    %v1038 = vunpack.c.h.b16 %v456
    %v1039 = vunpack.c.l.b16 %v457
    %v1040 = vunpack.c.h.b16 %v457
    %v1041 = vunpack.c.l.b16 %v458
    %v1042 = vunpack.c.h.b16 %v458
    %v1043 = vunpack.c.l.b16 %v459
    %v1044 = vunpack.c.h.b16 %v459
    %v1045 = vunpack.c.l.b16 %v460
    %v1046 = vunpack.c.h.b16 %v460
    %v1047 = vunpack.c.l.b16 %v461
    %v1048 = vunpack.c.h.b16 %v461
    %v1049 = vunpack.c.l.b16 %v462
    %v1050 = vunpack.c.h.b16 %v462
    %v1051 = vunpack.c.l.b16 %v463
    %v1052 = vunpack.c.h.b16 %v463
    %v1053 = vunpack.c.l.b16 %v464
    %v1054 = vunpack.c.h.b16 %v464
    %v1055 = vunpack.c.l.b16 %v465
    %v1056 = vunpack.c.h.b16 %v465
    %v1057 = vunpack.c.l.b16 %v466
    %v1058 = vunpack.c.h.b16 %v466
    %v1059 = vunpack.c.l.b16 %v467
    %v1060 = vunpack.c.h.b16 %v467
    %v1061 = vunpack.c.l.b16 %v468
    %v1062 = vunpack.c.h.b16 %v468
    %v1063 = vunpack.c.l.b16 %v469
    %v1064 = vunpack.c.h.b16 %v469
    %v1065 = vunpack.c.l.b16 %v470
    %v1066 = vunpack.c.h.b16 %v470
    %v1067 = vunpack.c.l.b16 %v471
    %v1068 = vunpack.c.h.b16 %v471
    %v1069 = vunpack.c.l.b16 %v472
    %v1070 = vunpack.c.h.b16 %v472
    %v1071 = vunpack.c.l.b16 %v473
    %v1072 = vunpack.c.h.b16 %v473
    %v1073 = vunpack.c.l.b16 %v474
    %v1074 = vunpack.c.h.b16 %v474
    %v1075 = vunpack.c.l.b16 %v475
    %v1076 = vunpack.c.h.b16 %v475
    %v1077 = vunpack.c.l.b16 %v476
    %v1078 = vunpack.c.h.b16 %v476
    %v1079 = vunpack.c.l.b16 %v477
    %v1080 = vunpack.c.h.b16 %v477
    %v1081 = vunpack.c.l.b16 %v478
    %v1082 = vunpack.c.h.b16 %v478
    %v1083 = vunpack.c.l.b16 %v479
    %v1084 = vunpack.c.h.b16 %v479
    %v1085 = vunpack.c.l.b16 %v480
    %v1086 = vunpack.c.h.b16 %v480
    %v1087 = vunpack.c.l.b16 %v481
    %v1088 = vunpack.c.h.b16 %v481
    %v1089 = vunpack.c.l.b16 %v482
    %v1090 = vunpack.c.h.b16 %v482
    %v1091 = vunpack.c.l.b16 %v483
    %v1092 = vunpack.c.h.b16 %v483
    %v1093 = vunpack.c.l.b16 %v484
    %v1094 = vunpack.c.h.b16 %v484
    %v1095 = vunpack.c.l.b16 %v485
    %v1096 = vunpack.c.h.b16 %v485
    %v1097 = vunpack.c.l.b16 %v486
    %v1098 = vunpack.c.h.b16 %v486
    %v1099 = vunpack.c.l.b16 %v487
    %v1100 = vunpack.c.h.b16 %v487
    %v1101 = vunpack.c.l.b16 %v488
    %v1102 = vunpack.c.h.b16 %v488
    %v1103 = vunpack.c.l.b16 %v489
    %v1104 = vunpack.c.h.b16 %v489
    %v1105 = vunpack.c.l.b16 %v490
    %v1106 = vunpack.c.h.b16 %v490
    %v1107 = vunpack.c.l.b16 %v491
    %v1108 = vunpack.c.h.b16 %v491
    %v1109 = vunpack.c.l.b16 %v492
    %v1110 = vunpack.c.h.b16 %v492
    %v1111 = vunpack.c.l.b16 %v493
    %v1112 = vunpack.c.h.b16 %v493
    %v1113 = vunpack.c.l.b16 %v494
    %v1114 = vunpack.c.h.b16 %v494
    %v1115 = vunpack.c.l.b16 %v495
    %v1116 = vunpack.c.h.b16 %v495
    %v1117 = vunpack.c.l.b16 %v496
    %v1118 = vunpack.c.h.b16 %v496
    %v1119 = vunpack.c.l.b16 %v497
    %v1120 = vunpack.c.h.b16 %v497
    %v1121 = vunpack.c.l.b16 %v498
    %v1122 = vunpack.c.h.b16 %v498
    %v1123 = vunpack.c.l.b16 %v499
    %v1124 = vunpack.c.h.b16 %v499
    %v1125 = vunpack.c.l.b16 %v500
    %v1126 = vunpack.c.h.b16 %v500
    %v1127 = vunpack.c.l.b16 %v501
    %v1128 = vunpack.c.h.b16 %v501
    %v1129 = vunpack.c.l.b16 %v502
    %v1130 = vunpack.c.h.b16 %v502
    %v1131 = vunpack.c.l.b16 %v503
    %v1132 = vunpack.c.h.b16 %v503
    %v1133 = vunpack.c.l.b16 %v504
    %v1134 = vunpack.c.h.b16 %v504
    %v1135 = vunpack.c.l.b16 %v505
    %v1136 = vunpack.c.h.b16 %v505
    %v1137 = vunpack.c.l.b16 %v506
    %v1138 = vunpack.c.h.b16 %v506
    %v1139 = vunpack.c.l.b16 %v507
    %v1140 = vunpack.c.h.b16 %v507
    %v1141 = vunpack.c.l.b16 %v508
    %v1142 = vunpack.c.h.b16 %v508
    %v1143 = vunpack.c.l.b16 %v509
    %v1144 = vunpack.c.h.b16 %v509
    %v1145 = vunpack.c.l.b16 %v510
    %v1146 = vunpack.c.h.b16 %v510
    %v1147 = vunpack.c.l.b16 %v511
    %v1148 = vunpack.c.h.b16 %v511
    %v1149 = vunpack.c.l.b16 %v512
    %v1150 = vunpack.c.h.b16 %v512
    %v1151 = vunpack.c.l.b16 %v513
    %v1152 = vunpack.c.h.b16 %v513
    %v1153 = vunpack.c.l.b16 %v514
    %v1154 = vunpack.c.h.b16 %v514
    %v1155 = vunpack.c.l.b16 %v515
    %v1156 = vunpack.c.h.b16 %v515
    %v1157 = vunpack.c.l.b16 %v516
    %v1158 = vunpack.c.h.b16 %v516
    %v1159 = vunpack.c.l.b16 %v517
    %v1160 = vunpack.c.h.b16 %v517
    %v1161 = vunpack.c.l.b16 %v518
    %v1162 = vunpack.c.h.b16 %v518
    %v1163 = vunpack.c.l.b16 %v519
    %v1164 = vunpack.c.h.b16 %v519
    %v1165 = vunpack.c.l.b16 %v520
    %v1166 = vunpack.c.h.b16 %v520
    %v1167 = vunpack.c.l.b16 %v521
    %v1168 = vunpack.c.h.b16 %v521
    %v1169 = vunpack.c.l.b16 %v522
    %v1170 = vunpack.c.h.b16 %v522
    %v1171 = vunpack.c.l.b16 %v523
    %v1172 = vunpack.c.h.b16 %v523
    %v1173 = vunpack.c.l.b16 %v524
    %v1174 = vunpack.c.h.b16 %v524
    %v1175 = vunpack.c.l.b16 %v525
    %v1176 = vunpack.c.h.b16 %v525
    %v1177 = vunpack.c.l.b16 %v526
    %v1178 = vunpack.c.h.b16 %v526
    %v1179 = vunpack.c.l.b16 %v527
    %v1180 = vunpack.c.h.b16 %v527
    %v1181 = vunpack.c.l.b16 %v528
    %v1182 = vunpack.c.h.b16 %v528
    %v1183 = vunpack.c.l.b16 %v529
    %v1184 = vunpack.c.h.b16 %v529
    %v1185 = vunpack.c.l.b16 %v530
    %v1186 = vunpack.c.h.b16 %v530
    %v1187 = vunpack.c.l.b16 %v531
    %v1188 = vunpack.c.h.b16 %v531
    %v1189 = vunpack.c.l.b16 %v532
    %v1190 = vunpack.c.h.b16 %v532
    %v1191 = vunpack.c.l.b16 %v533
    %v1192 = vunpack.c.h.b16 %v533
    %v1193 = vunpack.c.l.b16 %v534
    %v1194 = vunpack.c.h.b16 %v534
    %v1195 = vunpack.c.l.b16 %v535
    %v1196 = vunpack.c.h.b16 %v535
    %v1197 = vunpack.c.l.b16 %v536
    %v1198 = vunpack.c.h.b16 %v536
    %v1199 = vunpack.c.l.b16 %v537
    %v1200 = vunpack.c.h.b16 %v537
    %v1201 = vunpack.c.l.b16 %v538
    %v1202 = vunpack.c.h.b16 %v538
    %v1203 = vunpack.c.l.b16 %v539
    %v1204 = vunpack.c.h.b16 %v539
    %v1205 = vunpack.c.l.b16 %v540
    %v1206 = vunpack.c.h.b16 %v540
    %v1207 = vunpack.c.l.b16 %v541
    %v1208 = vunpack.c.h.b16 %v541
    %v1209 = vunpack.c.l.b16 %v542
    %v1210 = vunpack.c.h.b16 %v542
    %v1211 = vunpack.c.l.b16 %v543
    %v1212 = vunpack.c.h.b16 %v543
    %v1213 = vunpack.c.l.b16 %v544
    %v1214 = vunpack.c.h.b16 %v544
    %v1215 = vunpack.c.l.b16 %v545
    %v1216 = vunpack.c.h.b16 %v545
    %v1217 = vunpack.c.l.b16 %v546
    %v1218 = vunpack.c.h.b16 %v546
    %v1219 = vunpack.c.l.b16 %v547
    %v1220 = vunpack.c.h.b16 %v547
    %v1221 = vunpack.c.l.b16 %v548
    %v1222 = vunpack.c.h.b16 %v548
    %v1223 = vunpack.c.l.b16 %v549
    %v1224 = vunpack.c.h.b16 %v549
    %v1225 = vunpack.c.l.b16 %v550
    %v1226 = vunpack.c.h.b16 %v550
    %v1227 = vunpack.c.l.b16 %v551
    %v1228 = vunpack.c.h.b16 %v551
    %v1229 = vunpack.c.l.b16 %v552
    %v1230 = vunpack.c.h.b16 %v552
    %v1231 = vunpack.c.l.b16 %v553
    %v1232 = vunpack.c.h.b16 %v553
    %v1233 = vunpack.c.l.b16 %v554
    %v1234 = vunpack.c.h.b16 %v554
    %v1235 = vunpack.c.l.b16 %v555
    %v1236 = vunpack.c.h.b16 %v555
    %v1237 = vunpack.c.l.b16 %v556
    %v1238 = vunpack.c.h.b16 %v556
    %v1239 = vunpack.c.l.b16 %v557
    %v1240 = vunpack.c.h.b16 %v557
    %v1241 = vunpack.c.l.b16 %v558
    %v1242 = vunpack.c.h.b16 %v558
    %v1243 = vunpack.c.l.b16 %v559
    %v1244 = vunpack.c.h.b16 %v559
    %v1245 = vunpack.c.l.b16 %v560
    %v1246 = vunpack.c.h.b16 %v560
    %v1247 = vunpack.c.l.b16 %v561
    %v1248 = vunpack.c.h.b16 %v561
    %v1249 = vunpack.c.l.b16 %v562
    %v1250 = vunpack.c.h.b16 %v562
    %v1251 = vunpack.c.l.b16 %v563
    %v1252 = vunpack.c.h.b16 %v563
    %v1253 = vunpack.c.l.b16 %v564
    %v1254 = vunpack.c.h.b16 %v564
    %v1255 = vunpack.c.l.b16 %v565
    %v1256 = vunpack.c.h.b16 %v565
    %v1257 = vunpack.c.l.b16 %v566
    %v1258 = vunpack.c.h.b16 %v566
    %v1259 = vunpack.c.l.b16 %v567
    %v1260 = vunpack.c.h.b16 %v567
    %v1261 = vunpack.c.l.b16 %v568
    %v1262 = vunpack.c.h.b16 %v568
    %v1263 = vunpack.c.l.b16 %v569
    %v1264 = vunpack.c.h.b16 %v569
    %v1265 = vunpack.c.l.b16 %v570
    %v1266 = vunpack.c.h.b16 %v570
    %v1267 = vunpack.c.l.b16 %v571
    %v1268 = vunpack.c.h.b16 %v571
    %v1269 = vunpack.c.l.b16 %v572
    %v1270 = vunpack.c.h.b16 %v572
    %v1271 = vunpack.c.l.b16 %v573
    %v1272 = vunpack.c.h.b16 %v573
    %v1273 = vunpack.c.l.b16 %v574
    %v1274 = vunpack.c.h.b16 %v574
    %v1275 = vunpack.c.l.b16 %v575
    %v1276 = vunpack.c.h.b16 %v575
    %v1277 = vunpack.c.l.b16 %v576
    %v1278 = vunpack.c.h.b16 %v576
    %v1279 = vunpack.c.l.b16 %v577
    %v1280 = vunpack.c.h.b16 %v577
    %v1281 = vunpack.c.l.b16 %v578
    %v1282 = vunpack.c.h.b16 %v578
    %v1283 = vunpack.c.l.b16 %v579
    %v1284 = vunpack.c.h.b16 %v579
    %v1285 = vunpack.c.l.b16 %v580
    %v1286 = vunpack.c.h.b16 %v580
    %v1287 = vunpack.c.l.b16 %v581
    %v1288 = vunpack.c.h.b16 %v581
    %v1289 = vunpack.c.l.b16 %v582
    %v1290 = vunpack.c.h.b16 %v582
    %v1291 = vunpack.c.l.b16 %v583
    %v1292 = vunpack.c.h.b16 %v583
    %v1293 = vunpack.c.l.b16 %v584
    %v1294 = vunpack.c.h.b16 %v584
    %v1295 = vunpack.c.l.b16 %v585
    %v1296 = vunpack.c.h.b16 %v585
    %v1297 = vunpack.c.l.b16 %v586
    %v1298 = vunpack.c.h.b16 %v586
    %v1299 = vunpack.c.l.b16 %v587
    %v1300 = vunpack.c.h.b16 %v587
    %v1301 = vunpack.c.l.b16 %v588
    %v1302 = vunpack.c.h.b16 %v588
    %v1303 = vunpack.c.l.b16 %v589
    %v1304 = vunpack.c.h.b16 %v589
    %v1305 = vunpack.c.l.b16 %v590
    %v1306 = vunpack.c.h.b16 %v590
    %v1307 = vunpack.c.l.b16 %v591
    %v1308 = vunpack.c.h.b16 %v591
    %v1309 = vunpack.c.l.b16 %v592
    %v1310 = vunpack.c.h.b16 %v592
    %v1311 = vunpack.c.l.b16 %v593
    %v1312 = vunpack.c.h.b16 %v593
    %v1313 = vunpack.c.l.b16 %v594
    %v1314 = vunpack.c.h.b16 %v594
    %v1315 = vunpack.c.l.b16 %v595
    %v1316 = vunpack.c.h.b16 %v595
    %v1317 = vunpack.c.l.b16 %v596
    %v1318 = vunpack.c.h.b16 %v596
    %v1319 = vunpack.c.l.b16 %v597
    %v1320 = vunpack.c.h.b16 %v597
    %v1321 = vunpack.c.l.b16 %v598
    %v1322 = vunpack.c.h.b16 %v598
    %v1323 = vunpack.c.l.b16 %v599
    %v1324 = vunpack.c.h.b16 %v599
    %v1325 = vunpack.c.l.b16 %v600
    %v1326 = vunpack.c.h.b16 %v600
    %v1327 = vunpack.c.l.b16 %v601
    %v1328 = vunpack.c.h.b16 %v601
    %v1329 = vunpack.c.l.b16 %v602
    %v1330 = vunpack.c.h.b16 %v602
    %v1331 = vunpack.c.l.b16 %v603
    %v1332 = vunpack.c.h.b16 %v603
    %v1333 = vunpack.c.l.b16 %v604
    %v1334 = vunpack.c.h.b16 %v604
    %v1335 = vunpack.c.l.b16 %v605
    %v1336 = vunpack.c.h.b16 %v605
    %v1337 = vunpack.c.l.b16 %v606
    %v1338 = vunpack.c.h.b16 %v606
    %v1339 = vunpack.c.l.b16 %v607
    %v1340 = vunpack.c.h.b16 %v607
    %v1341 = vunpack.c.l.b16 %v608
    %v1342 = vunpack.c.h.b16 %v608
    %v1343 = vunpack.c.l.b16 %v609
    %v1344 = vunpack.c.h.b16 %v609
    %v1345 = vunpack.c.l.b16 %v610
    %v1346 = vunpack.c.h.b16 %v610
    %v1347 = vunpack.c.l.b16 %v611
    %v1348 = vunpack.c.h.b16 %v611
    %v1349 = vunpack.c.l.b16 %v612
    %v1350 = vunpack.c.h.b16 %v612
    %v1351 = vunpack.c.l.b16 %v613
    %v1352 = vunpack.c.h.b16 %v613
    %v1353 = vunpack.c.l.b16 %v614
    %v1354 = vunpack.c.h.b16 %v614
    %v1355 = vunpack.c.l.b16 %v615
    %v1356 = vunpack.c.h.b16 %v615
    %v1357 = vunpack.c.l.b16 %v616
    %v1358 = vunpack.c.h.b16 %v616
    %v1359 = vunpack.c.l.b16 %v617
    %v1360 = vunpack.c.h.b16 %v617
    %v1361 = vunpack.c.l.b16 %v618
    %v1362 = vunpack.c.h.b16 %v618
    %v1363 = vunpack.c.l.b16 %v619
    %v1364 = vunpack.c.h.b16 %v619
    %v1365 = vunpack.c.l.b16 %v620
    %v1366 = vunpack.c.h.b16 %v620
    %v1367 = vunpack.c.l.b16 %v621
    %v1368 = vunpack.c.h.b16 %v621
    %v1369 = vunpack.c.l.b16 %v622
    %v1370 = vunpack.c.h.b16 %v622
    %v1371 = vunpack.c.l.b16 %v623
    %v1372 = vunpack.c.h.b16 %v623
    %v1373 = vunpack.c.l.b16 %v624
    %v1374 = vunpack.c.h.b16 %v624
    %v1375 = vunpack.c.l.b16 %v625
    %v1376 = vunpack.c.h.b16 %v625
    %v1377 = vunpack.c.l.b16 %v626
    %v1378 = vunpack.c.h.b16 %v626
    %v1379 = vunpack.c.l.b16 %v627
    %v1380 = vunpack.c.h.b16 %v627
    %v1381 = vunpack.c.l.b16 %v628
    %v1382 = vunpack.c.h.b16 %v628
    %v1383 = vunpack.c.l.b16 %v629
    %v1384 = vunpack.c.h.b16 %v629
    %v1385 = vunpack.c.l.b16 %v630
    %v1386 = vunpack.c.h.b16 %v630
    %v1387 = vunpack.c.l.b16 %v631
    %v1388 = vunpack.c.h.b16 %v631
    %v1389 = vunpack.c.l.b16 %v632
    %v1390 = vunpack.c.h.b16 %v632
    %v1391 = vunpack.c.l.b16 %v633
    %v1392 = vunpack.c.h.b16 %v633
    %v1393 = vunpack.c.l.b16 %v634
    %v1394 = vunpack.c.h.b16 %v634
    %v1395 = vunpack.c.l.b16 %v635
    %v1396 = vunpack.c.h.b16 %v635
    %v1397 = vunpack.c.l.b16 %v636
    %v1398 = vunpack.c.h.b16 %v636
    %v1399 = vunpack.c.l.b16 %v637
    %v1400 = vunpack.c.h.b16 %v637
    %v1401 = vunpack.c.l.b16 %v638
    %v1402 = vunpack.c.h.b16 %v638
    %v1403 = vunpack.c.l.b16 %v639
    %v1404 = vunpack.c.h.b16 %v639
    %v1405 = vunpack.c.l.b16 %v640
    %v1406 = vunpack.c.h.b16 %v640
    %v1407 = vunpack.c.l.b16 %v641
    %v1408 = vunpack.c.h.b16 %v641
    %v1409 = vunpack.c.l.b16 %v642
    %v1410 = vunpack.c.h.b16 %v642
    %v1411 = vunpack.c.l.b16 %v643
    %v1412 = vunpack.c.h.b16 %v643
    %v1413 = vunpack.c.l.b16 %v644
    %v1414 = vunpack.c.h.b16 %v644
    %v1415 = vunpack.c.l.b16 %v645
    %v1416 = vunpack.c.h.b16 %v645
    %v1417 = vunpack.c.l.b16 %v646
    %v1418 = vunpack.c.h.b16 %v646
    %v1419 = vunpack.c.l.b16 %v647
    %v1420 = vunpack.c.h.b16 %v647
    %v1421 = vunpack.c.l.b16 %v648
    %v1422 = vunpack.c.h.b16 %v648
    %v1423 = vunpack.c.l.b16 %v649
    %v1424 = vunpack.c.h.b16 %v649
    %v1425 = vunpack.c.l.b16 %v650
    %v1426 = vunpack.c.h.b16 %v650
    %v1427 = vunpack.c.l.b16 %v651
    %v1428 = vunpack.c.h.b16 %v651
    %v1429 = vunpack.c.l.b16 %v652
    %v1430 = vunpack.c.h.b16 %v652
    %v1431 = vunpack.c.l.b16 %v653
    %v1432 = vunpack.c.h.b16 %v653
    %v1433 = vunpack.c.l.b16 %v654
    %v1434 = vunpack.c.h.b16 %v654
    %v1435 = vunpack.c.l.b16 %v655
    %v1436 = vunpack.c.h.b16 %v655
    %v1437 = vunpack.c.l.b16 %v656
    %v1438 = vunpack.c.h.b16 %v656
    %v1439 = vunpack.c.l.b16 %v657
    %v1440 = vunpack.c.h.b16 %v657
    %v1441 = vunpack.c.l.b16 %v658
    %v1442 = vunpack.c.h.b16 %v658
    %v1443 = vunpack.c.l.b16 %v659
    %v1444 = vunpack.c.h.b16 %v659
    %v1445 = vunpack.c.l.b16 %v660
    %v1446 = vunpack.c.h.b16 %v660
    %v1447 = vunpack.c.l.b16 %v661
    %v1448 = vunpack.c.h.b16 %v661
    %v1449 = vunpack.c.l.b16 %v662
    %v1450 = vunpack.c.h.b16 %v662
    %v1451 = vunpack.c.l.b16 %v663
    %v1452 = vunpack.c.h.b16 %v663
    %v1453 = vunpack.c.l.b16 %v664
    %v1454 = vunpack.c.h.b16 %v664
    %v1455 = vpack.c.b16 %v947, %v943
    %v1456 = vpack.c.b16 %v948, %v944
    %v1457 = vpack.c.b16 %v949, %v945
    %v1458 = vpack.c.b16 %v950, %v946
    %v1459 = vpack.c.b16 %v955, %v951
    %v1460 = vpack.c.b16 %v956, %v952
    %v1461 = vpack.c.b16 %v957, %v953
    %v1462 = vpack.c.b16 %v958, %v954
    %v1463 = vpack.c.b16 %v963, %v959
    %v1464 = vpack.c.b16 %v964, %v960
    %v1465 = vpack.c.b16 %v965, %v961
    %v1466 = vpack.c.b16 %v966, %v962
    %v1467 = vpack.c.b16 %v971, %v967
    %v1468 = vpack.c.b16 %v972, %v968
    %v1469 = vpack.c.b16 %v973, %v969
    %v1470 = vpack.c.b16 %v974, %v970
    %v1471 = vpack.c.b16 %v979, %v975
    %v1472 = vpack.c.b16 %v980, %v976
    %v1473 = vpack.c.b16 %v981, %v977
    %v1474 = vpack.c.b16 %v982, %v978
    %v1475 = vpack.c.b16 %v987, %v983
    %v1476 = vpack.c.b16 %v988, %v984
    %v1477 = vpack.c.b16 %v989, %v985
    %v1478 = vpack.c.b16 %v990, %v986
    %v1479 = vpack.c.b16 %v995, %v991
    %v1480 = vpack.c.b16 %v996, %v992
    %v1481 = vpack.c.b16 %v997, %v993
    %v1482 = vpack.c.b16 %v998, %v994
    %v1483 = vpack.c.b16 %v1003, %v999
    %v1484 = vpack.c.b16 %v1004, %v1000
    %v1485 = vpack.c.b16 %v1005, %v1001
    %v1486 = vpack.c.b16 %v1006, %v1002
    %v1487 = vpack.c.b16 %v1011, %v1007
    %v1488 = vpack.c.b16 %v1012, %v1008
    %v1489 = vpack.c.b16 %v1013, %v1009
    %v1490 = vpack.c.b16 %v1014, %v1010
    %v1491 = vpack.c.b16 %v1019, %v1015
    %v1492 = vpack.c.b16 %v1020, %v1016
    %v1493 = vpack.c.b16 %v1021, %v1017
    %v1494 = vpack.c.b16 %v1022, %v1018
    %v1495 = vpack.c.b16 %v1027, %v1023
    %v1496 = vpack.c.b16 %v1028, %v1024
    %v1497 = vpack.c.b16 %v1029, %v1025
    %v1498 = vpack.c.b16 %v1030, %v1026
    %v1499 = vpack.c.b16 %v1035, %v1031
    %v1500 = vpack.c.b16 %v1036, %v1032
    %v1501 = vpack.c.b16 %v1037, %v1033
    %v1502 = vpack.c.b16 %v1038, %v1034
    %v1503 = vpack.c.b16 %v1043, %v1039
    %v1504 = vpack.c.b16 %v1044, %v1040
    %v1505 = vpack.c.b16 %v1045, %v1041
    %v1506 = vpack.c.b16 %v1046, %v1042
    %v1507 = vpack.c.b16 %v1051, %v1047
    %v1508 = vpack.c.b16 %v1052, %v1048
    %v1509 = vpack.c.b16 %v1053, %v1049
    %v1510 = vpack.c.b16 %v1054, %v1050
    %v1511 = vpack.c.b16 %v1059, %v1055
    %v1512 = vpack.c.b16 %v1060, %v1056
    %v1513 = vpack.c.b16 %v1061, %v1057
    %v1514 = vpack.c.b16 %v1062, %v1058
    %v1515 = vpack.c.b16 %v1067, %v1063
    %v1516 = vpack.c.b16 %v1068, %v1064
    %v1517 = vpack.c.b16 %v1069, %v1065
    %v1518 = vpack.c.b16 %v1070, %v1066
    %v1519 = vpack.c.b16 %v1075, %v1071
    %v1520 = vpack.c.b16 %v1076, %v1072
    %v1521 = vpack.c.b16 %v1077, %v1073
    %v1522 = vpack.c.b16 %v1078, %v1074
    %v1523 = vpack.c.b16 %v1083, %v1079
    %v1524 = vpack.c.b16 %v1084, %v1080
    %v1525 = vpack.c.b16 %v1085, %v1081
    %v1526 = vpack.c.b16 %v1086, %v1082
    %v1527 = vpack.c.b16 %v1091, %v1087
    %v1528 = vpack.c.b16 %v1092, %v1088
    %v1529 = vpack.c.b16 %v1093, %v1089
    %v1530 = vpack.c.b16 %v1094, %v1090
    %v1531 = vpack.c.b16 %v1099, %v1095
    %v1532 = vpack.c.b16 %v1100, %v1096
    %v1533 = vpack.c.b16 %v1101, %v1097
    %v1534 = vpack.c.b16 %v1102, %v1098
    %v1535 = vpack.c.b16 %v1107, %v1103
    %v1536 = vpack.c.b16 %v1108, %v1104
    %v1537 = vpack.c.b16 %v1109, %v1105
    %v1538 = vpack.c.b16 %v1110, %v1106
    %v1539 = vpack.c.b16 %v1115, %v1111
    %v1540 = vpack.c.b16 %v1116, %v1112
    %v1541 = vpack.c.b16 %v1117, %v1113
    %v1542 = vpack.c.b16 %v1118, %v1114
    %v1543 = vpack.c.b16 %v1123, %v1119
    %v1544 = vpack.c.b16 %v1124, %v1120
    %v1545 = vpack.c.b16 %v1125, %v1121
    %v1546 = vpack.c.b16 %v1126, %v1122
    %v1547 = vpack.c.b16 %v1131, %v1127
    %v1548 = vpack.c.b16 %v1132, %v1128
    %v1549 = vpack.c.b16 %v1133, %v1129
    %v1550 = vpack.c.b16 %v1134, %v1130
    %v1551 = vpack.c.b16 %v1139, %v1135
    %v1552 = vpack.c.b16 %v1140, %v1136
    %v1553 = vpack.c.b16 %v1141, %v1137
    %v1554 = vpack.c.b16 %v1142, %v1138
    %v1555 = vpack.c.b16 %v1147, %v1143
    %v1556 = vpack.c.b16 %v1148, %v1144
    %v1557 = vpack.c.b16 %v1149, %v1145
    %v1558 = vpack.c.b16 %v1150, %v1146
    %v1559 = vpack.c.b16 %v1155, %v1151
    %v1560 = vpack.c.b16 %v1156, %v1152
    %v1561 = vpack.c.b16 %v1157, %v1153
    %v1562 = vpack.c.b16 %v1158, %v1154
    %v1563 = vpack.c.b16 %v1163, %v1159
    %v1564 = vpack.c.b16 %v1164, %v1160
    %v1565 = vpack.c.b16 %v1165, %v1161
    %v1566 = vpack.c.b16 %v1166, %v1162
    %v1567 = vpack.c.b16 %v1171, %v1167
    %v1568 = vpack.c.b16 %v1172, %v1168
    %v1569 = vpack.c.b16 %v1173, %v1169
    %v1570 = vpack.c.b16 %v1174, %v1170
    %v1571 = vpack.c.b16 %v1179, %v1175
    %v1572 = vpack.c.b16 %v1180, %v1176
    %v1573 = vpack.c.b16 %v1181, %v1177
    %v1574 = vpack.c.b16 %v1182, %v1178
    %v1575 = vpack.c.b16 %v1187, %v1183
    %v1576 = vpack.c.b16 %v1188, %v1184
    %v1577 = vpack.c.b16 %v1189, %v1185
    %v1578 = vpack.c.b16 %v1190, %v1186
    %v1579 = vpack.c.b16 %v1195, %v1191
    %v1580 = vpack.c.b16 %v1196, %v1192
    %v1581 = vpack.c.b16 %v1197, %v1193
    %v1582 = vpack.c.b16 %v1198, %v1194
    %v1583 = vpack.c.b16 %v1203, %v1199
    %v1584 = vpack.c.b16 %v1204, %v1200
    %v1585 = vpack.c.b16 %v1205, %v1201
    %v1586 = vpack.c.b16 %v1206, %v1202
    %v1587 = vpack.c.b16 %v1211, %v1207
    %v1588 = vpack.c.b16 %v1212, %v1208
    %v1589 = vpack.c.b16 %v1213, %v1209
    %v1590 = vpack.c.b16 %v1214, %v1210
    %v1591 = vpack.c.b16 %v1219, %v1215
    %v1592 = vpack.c.b16 %v1220, %v1216
    %v1593 = vpack.c.b16 %v1221, %v1217
    %v1594 = vpack.c.b16 %v1222, %v1218
    %v1595 = vpack.c.b16 %v1227, %v1223
    %v1596 = vpack.c.b16 %v1228, %v1224
    %v1597 = vpack.c.b16 %v1229, %v1225
    %v1598 = vpack.c.b16 %v1230, %v1226
    %v1599 = vpack.c.b16 %v1235, %v1231
    %v1600 = vpack.c.b16 %v1236, %v1232
    %v1601 = vpack.c.b16 %v1237, %v1233
    %v1602 = vpack.c.b16 %v1238, %v1234
    %v1603 = vpack.c.b16 %v1243, %v1239
    %v1604 = vpack.c.b16 %v1244, %v1240
    %v1605 = vpack.c.b16 %v1245, %v1241
    %v1606 = vpack.c.b16 %v1246, %v1242
    %v1607 = vpack.c.b16 %v1251, %v1247
    %v1608 = vpack.c.b16 %v1252, %v1248
    %v1609 = vpack.c.b16 %v1253, %v1249
    %v1610 = vpack.c.b16 %v1254, %v1250
    %v1611 = vpack.c.b16 %v1259, %v1255
    %v1612 = vpack.c.b16 %v1260, %v1256
    %v1613 = vpack.c.b16 %v1261, %v1257
    %v1614 = vpack.c.b16 %v1262, %v1258
    %v1615 = vpack.c.b16 %v1267, %v1263
    %v1616 = vpack.c.b16 %v1268, %v1264
    %v1617 = vpack.c.b16 %v1269, %v1265
    %v1618 = vpack.c.b16 %v1270, %v1266
    %v1619 = vpack.c.b16 %v1275, %v1271
    %v1620 = vpack.c.b16 %v1276, %v1272
    %v1621 = vpack.c.b16 %v1277, %v1273
    %v1622 = vpack.c.b16 %v1278, %v1274
    %v1623 = vpack.c.b16 %v1283, %v1279
    %v1624 = vpack.c.b16 %v1284, %v1280
    %v1625 = vpack.c.b16 %v1285, %v1281
    %v1626 = vpack.c.b16 %v1286, %v1282
    %v1627 = vpack.c.b16 %v1291, %v1287
    %v1628 = vpack.c.b16 %v1292, %v1288
    %v1629 = vpack.c.b16 %v1293, %v1289
    %v1630 = vpack.c.b16 %v1294, %v1290
    %v1631 = vpack.c.b16 %v1299, %v1295
    %v1632 = vpack.c.b16 %v1300, %v1296
    %v1633 = vpack.c.b16 %v1301, %v1297
    %v1634 = vpack.c.b16 %v1302, %v1298
    %v1635 = vpack.c.b16 %v1307, %v1303
    %v1636 = vpack.c.b16 %v1308, %v1304
    %v1637 = vpack.c.b16 %v1309, %v1305
    %v1638 = vpack.c.b16 %v1310, %v1306
    %v1639 = vpack.c.b16 %v1315, %v1311
    %v1640 = vpack.c.b16 %v1316, %v1312
    %v1641 = vpack.c.b16 %v1317, %v1313
    %v1642 = vpack.c.b16 %v1318, %v1314
    %v1643 = vpack.c.b16 %v1323, %v1319
    %v1644 = vpack.c.b16 %v1324, %v1320
    %v1645 = vpack.c.b16 %v1325, %v1321
    %v1646 = vpack.c.b16 %v1326, %v1322
    %v1647 = vpack.c.b16 %v1331, %v1327
    %v1648 = vpack.c.b16 %v1332, %v1328
    %v1649 = vpack.c.b16 %v1333, %v1329
    %v1650 = vpack.c.b16 %v1334, %v1330
    %v1651 = vpack.c.b16 %v1339, %v1335
    %v1652 = vpack.c.b16 %v1340, %v1336
    %v1653 = vpack.c.b16 %v1341, %v1337
    %v1654 = vpack.c.b16 %v1342, %v1338
    %v1655 = vpack.c.b16 %v1347, %v1343
    %v1656 = vpack.c.b16 %v1348, %v1344
    %v1657 = vpack.c.b16 %v1349, %v1345
    %v1658 = vpack.c.b16 %v1350, %v1346
    %v1659 = vpack.c.b16 %v1355, %v1351
    %v1660 = vpack.c.b16 %v1356, %v1352
    %v1661 = vpack.c.b16 %v1357, %v1353
    %v1662 = vpack.c.b16 %v1358, %v1354
    %v1663 = vpack.c.b16 %v1363, %v1359
    %v1664 = vpack.c.b16 %v1364, %v1360
    %v1665 = vpack.c.b16 %v1365, %v1361
    %v1666 = vpack.c.b16 %v1366, %v1362
    %v1667 = vpack.c.b16 %v1371, %v1367
    %v1668 = vpack.c.b16 %v1372, %v1368
    %v1669 = vpack.c.b16 %v1373, %v1369
    %v1670 = vpack.c.b16 %v1374, %v1370
    %v1671 = vpack.c.b16 %v1379, %v1375
    %v1672 = vpack.c.b16 %v1380, %v1376
    %v1673 = vpack.c.b16 %v1381, %v1377
    %v1674 = vpack.c.b16 %v1382, %v1378
    %v1675 = vpack.c.b16 %v1387, %v1383
    %v1676 = vpack.c.b16 %v1388, %v1384
    %v1677 = vpack.c.b16 %v1389, %v1385
    %v1678 = vpack.c.b16 %v1390, %v1386
    %v1679 = vpack.c.b16 %v1395, %v1391
    %v1680 = vpack.c.b16 %v1396, %v1392
    %v1681 = vpack.c.b16 %v1397, %v1393
    %v1682 = vpack.c.b16 %v1398, %v1394
    %v1683 = vpack.c.b16 %v1403, %v1399
    %v1684 = vpack.c.b16 %v1404, %v1400
    %v1685 = vpack.c.b16 %v1405, %v1401
    %v1686 = vpack.c.b16 %v1406, %v1402
    %v1687 = vpack.c.b16 %v1411, %v1407
    %v1688 = vpack.c.b16 %v1412, %v1408
    %v1689 = vpack.c.b16 %v1413, %v1409
    %v1690 = vpack.c.b16 %v1414, %v1410
    %v1691 = vpack.c.b16 %v1419, %v1415
    %v1692 = vpack.c.b16 %v1420, %v1416
    %v1693 = vpack.c.b16 %v1421, %v1417
    %v1694 = vpack.c.b16 %v1422, %v1418
    %v1695 = vpack.c.b16 %v1427, %v1423
    %v1696 = vpack.c.b16 %v1428, %v1424
    %v1697 = vpack.c.b16 %v1429, %v1425
    %v1698 = vpack.c.b16 %v1430, %v1426
    %v1699 = vpack.c.b16 %v1435, %v1431
    %v1700 = vpack.c.b16 %v1436, %v1432
    %v1701 = vpack.c.b16 %v1437, %v1433
    %v1702 = vpack.c.b16 %v1438, %v1434
    %v1703 = vpack.c.b16 %v1443, %v1439
    %v1704 = vpack.c.b16 %v1444, %v1440
    %v1705 = vpack.c.b16 %v1445, %v1441
    %v1706 = vpack.c.b16 %v1446, %v1442
    %v1707 = vpack.c.b16 %v1451, %v1447
    %v1708 = vpack.c.b16 %v1452, %v1448
    %v1709 = vpack.c.b16 %v1453, %v1449
    %v1710 = vpack.c.b16 %v1454, %v1450
    %1967 = vmatprep.subr.bf16.mxu0 %v1456
    %1968 = vmatpush1.bf16.msra.mxu0 %v1455
    %1969 = vmatprep.subr.bf16.mxu0 %v1460
    %1970 = vmatpush1.bf16.msra.mxu0 %v1459
    %1971 = vmatprep.subr.bf16.mxu0 %v1464
    %1972 = vmatpush1.bf16.msra.mxu0 %v1463
    %1973 = vmatprep.subr.bf16.mxu0 %v1468
    %1974 = vmatpush1.bf16.msra.mxu0 %v1467
    %1975 = vmatprep.subr.bf16.mxu0 %v1472
    %1976 = vmatpush1.bf16.msra.mxu0 %v1471
    %1977 = vmatprep.subr.bf16.mxu0 %v1476
    %1978 = vmatpush1.bf16.msra.mxu0 %v1475
    %1979 = vmatprep.subr.bf16.mxu0 %v1480
    %1980 = vmatpush1.bf16.msra.mxu0 %v1479
    %1981 = vmatprep.subr.bf16.mxu0 %v1484
    %1982 = vmatpush1.bf16.msra.mxu0 %v1483
    %1983 = vmatprep.subr.bf16.mxu0 %v1488
    %1984 = vmatpush1.bf16.msra.mxu0 %v1487
    %1985 = vmatprep.subr.bf16.mxu0 %v1492
    %1986 = vmatpush1.bf16.msra.mxu0 %v1491
    %1987 = vmatprep.subr.bf16.mxu0 %v1496
    %1988 = vmatpush1.bf16.msra.mxu0 %v1495
    %1989 = vmatprep.subr.bf16.mxu0 %v1500
    %1990 = vmatpush1.bf16.msra.mxu0 %v1499
    %1991 = vmatprep.subr.bf16.mxu0 %v1504
    %1992 = vmatpush1.bf16.msra.mxu0 %v1503
    %1993 = vmatprep.subr.bf16.mxu0 %v1508
    %1994 = vmatpush1.bf16.msra.mxu0 %v1507
    %1995 = vmatprep.subr.bf16.mxu0 %v1512
    %1996 = vmatpush1.bf16.msra.mxu0 %v1511
    %1997 = vmatprep.subr.bf16.mxu0 %v1516
    %1998 = vmatpush1.bf16.msra.mxu0 %v1515
    %1999 = vmatprep.mubr.bf16.mxu0 %v402
    %2000 = vmatmul.mubr.bf16.gmra.mrb[0].mxu0 %v401
    %v2001 = vpop.f32.mrb[0].mxu0
    %v2002 = vadd.f32 %v670, %v2001
    %v2003 = vpop.f32.mrb[0].mxu0
    %v2004 = vadd.f32 %v674, %v2003
    %v2005 = vpop.f32.mrb[0].mxu0
    %v2006 = vpop.f32.mrb[0].mxu0
    %2007 = vdwg.mxu0
    %2008 = vmatprep.subr.bf16.mxu0 %v1520
    %2009 = vmatpush1.bf16.msra.mxu0 %v1519
    %2010 = vmatprep.subr.bf16.mxu0 %v1524
    %2011 = vmatpush1.bf16.msra.mxu0 %v1523
    %2012 = vmatprep.subr.bf16.mxu0 %v1528
    %2013 = vmatpush1.bf16.msra.mxu0 %v1527
    %2014 = vmatprep.subr.bf16.mxu0 %v1532
    %2015 = vmatpush1.bf16.msra.mxu0 %v1531
    %2016 = vmatprep.subr.bf16.mxu0 %v1536
    %2017 = vmatpush1.bf16.msra.mxu0 %v1535
    %2018 = vmatprep.subr.bf16.mxu0 %v1540
    %2019 = vmatpush1.bf16.msra.mxu0 %v1539
    %2020 = vmatprep.subr.bf16.mxu0 %v1544
    %2021 = vmatpush1.bf16.msra.mxu0 %v1543
    %2022 = vmatprep.subr.bf16.mxu0 %v1548
    %2023 = vmatpush1.bf16.msra.mxu0 %v1547
    %2024 = vmatprep.subr.bf16.mxu0 %v1552
    %2025 = vmatpush1.bf16.msra.mxu0 %v1551
    %2026 = vmatprep.subr.bf16.mxu0 %v1556
    %2027 = vmatpush1.bf16.msra.mxu0 %v1555
    %2028 = vmatprep.subr.bf16.mxu0 %v1560
    %2029 = vmatpush1.bf16.msra.mxu0 %v1559
    %2030 = vmatprep.subr.bf16.mxu0 %v1564
    %2031 = vmatpush1.bf16.msra.mxu0 %v1563
    %2032 = vmatprep.subr.bf16.mxu0 %v1568
    %2033 = vmatpush1.bf16.msra.mxu0 %v1567
    %2034 = vmatprep.subr.bf16.mxu0 %v1572
    %2035 = vmatpush1.bf16.msra.mxu0 %v1571
    %2036 = vmatprep.subr.bf16.mxu0 %v1576
    %2037 = vmatpush1.bf16.msra.mxu0 %v1575
    %2038 = vmatprep.subr.bf16.mxu0 %v1580
    %2039 = vmatpush1.bf16.msra.mxu0 %v1579
    %2040 = vmatprep.mubr.bf16.mxu0 %v404
    %2041 = vmatmul.mubr.bf16.gmra.mrb[0].mxu0 %v403
    %v2042 = vpop.f32.mrb[0].mxu0
    %v2043 = vadd.f32 %v2002, %v2042
    %v2044 = vpop.f32.mrb[0].mxu0
    %v2045 = vadd.f32 %v2004, %v2044
    %v2046 = vpop.f32.mrb[0].mxu0
    %v2047 = vpop.f32.mrb[0].mxu0
    %2048 = vdwg.mxu0
    %2049 = vmatprep.subr.bf16.mxu0 %v1584
    %2050 = vmatpush1.bf16.msra.mxu0 %v1583
    %2051 = vmatprep.subr.bf16.mxu0 %v1588
    %2052 = vmatpush1.bf16.msra.mxu0 %v1587
    %2053 = vmatprep.subr.bf16.mxu0 %v1592
    %2054 = vmatpush1.bf16.msra.mxu0 %v1591
    %2055 = vmatprep.subr.bf16.mxu0 %v1596
    %2056 = vmatpush1.bf16.msra.mxu0 %v1595
    %2057 = vmatprep.subr.bf16.mxu0 %v1600
    %2058 = vmatpush1.bf16.msra.mxu0 %v1599
    %2059 = vmatprep.subr.bf16.mxu0 %v1604
    %2060 = vmatpush1.bf16.msra.mxu0 %v1603
    %2061 = vmatprep.subr.bf16.mxu0 %v1608
    %2062 = vmatpush1.bf16.msra.mxu0 %v1607
    %2063 = vmatprep.subr.bf16.mxu0 %v1612
    %2064 = vmatpush1.bf16.msra.mxu0 %v1611
    %2065 = vmatprep.subr.bf16.mxu0 %v1616
    %2066 = vmatpush1.bf16.msra.mxu0 %v1615
    %2067 = vmatprep.subr.bf16.mxu0 %v1620
    %2068 = vmatpush1.bf16.msra.mxu0 %v1619
    %2069 = vmatprep.subr.bf16.mxu0 %v1624
    %2070 = vmatpush1.bf16.msra.mxu0 %v1623
    %2071 = vmatprep.subr.bf16.mxu0 %v1628
    %2072 = vmatpush1.bf16.msra.mxu0 %v1627
    %2073 = vmatprep.subr.bf16.mxu0 %v1632
    %2074 = vmatpush1.bf16.msra.mxu0 %v1631
    %2075 = vmatprep.subr.bf16.mxu0 %v1636
    %2076 = vmatpush1.bf16.msra.mxu0 %v1635
    %2077 = vmatprep.subr.bf16.mxu0 %v1640
    %2078 = vmatpush1.bf16.msra.mxu0 %v1639
    %2079 = vmatprep.subr.bf16.mxu0 %v1644
    %2080 = vmatpush1.bf16.msra.mxu0 %v1643
    %2081 = vmatprep.mubr.bf16.mxu0 %v406
    %2082 = vmatmul.mubr.bf16.gmra.mrb[0].mxu0 %v405
    %v2083 = vpop.f32.mrb[0].mxu0
    %v2084 = vadd.f32 %v2043, %v2083
    %v2085 = vpop.f32.mrb[0].mxu0
    %v2086 = vadd.f32 %v2045, %v2085
    %v2087 = vpop.f32.mrb[0].mxu0
    %v2088 = vpop.f32.mrb[0].mxu0
    %2089 = vdwg.mxu0
    %2090 = vmatprep.subr.bf16.mxu0 %v1648
    %2091 = vmatpush1.bf16.msra.mxu0 %v1647
    %2092 = vmatprep.subr.bf16.mxu0 %v1652
    %2093 = vmatpush1.bf16.msra.mxu0 %v1651
    %2094 = vmatprep.subr.bf16.mxu0 %v1656
    %2095 = vmatpush1.bf16.msra.mxu0 %v1655
    %2096 = vmatprep.subr.bf16.mxu0 %v1660
    %2097 = vmatpush1.bf16.msra.mxu0 %v1659
    %2098 = vmatprep.subr.bf16.mxu0 %v1664
    %2099 = vmatpush1.bf16.msra.mxu0 %v1663
    %2100 = vmatprep.subr.bf16.mxu0 %v1668
    %2101 = vmatpush1.bf16.msra.mxu0 %v1667
    %2102 = vmatprep.subr.bf16.mxu0 %v1672
    %2103 = vmatpush1.bf16.msra.mxu0 %v1671
    %2104 = vmatprep.subr.bf16.mxu0 %v1676
    %2105 = vmatpush1.bf16.msra.mxu0 %v1675
    %2106 = vmatprep.subr.bf16.mxu0 %v1680
    %2107 = vmatpush1.bf16.msra.mxu0 %v1679
    %2108 = vmatprep.subr.bf16.mxu0 %v1684
    %2109 = vmatpush1.bf16.msra.mxu0 %v1683
    %2110 = vmatprep.subr.bf16.mxu0 %v1688
    %2111 = vmatpush1.bf16.msra.mxu0 %v1687
    %2112 = vmatprep.subr.bf16.mxu0 %v1692
    %2113 = vmatpush1.bf16.msra.mxu0 %v1691
    %2114 = vmatprep.subr.bf16.mxu0 %v1696
    %2115 = vmatpush1.bf16.msra.mxu0 %v1695
    %2116 = vmatprep.subr.bf16.mxu0 %v1700
    %2117 = vmatpush1.bf16.msra.mxu0 %v1699
    %2118 = vmatprep.subr.bf16.mxu0 %v1704
    %2119 = vmatpush1.bf16.msra.mxu0 %v1703
    %2120 = vmatprep.subr.bf16.mxu0 %v1708
    %2121 = vmatpush1.bf16.msra.mxu0 %v1707
    %2122 = vmatprep.mubr.bf16.mxu0 %v408
    %2123 = vmatmul.mubr.bf16.gmra.mrb[0].mxu0 %v407
    %v2124 = vpop.f32.mrb[0].mxu0
    %v2125 = vadd.f32 %v2084, %v2124
    %v2126 = vpop.f32.mrb[0].mxu0
    %v2127 = vadd.f32 %v2086, %v2126
    %v2128 = vpop.f32.mrb[0].mxu0
    %v2129 = vpop.f32.mrb[0].mxu0
    %2130 = vdwg.mxu0
    %2131 = vmatprep.subr.bf16.mxu0 %v1458
    %2132 = vmatpush1.bf16.msra.mxu0 %v1457
    %2133 = vmatprep.subr.bf16.mxu0 %v1462
    %2134 = vmatpush1.bf16.msra.mxu0 %v1461
    %2135 = vmatprep.subr.bf16.mxu0 %v1466
    %2136 = vmatpush1.bf16.msra.mxu0 %v1465
    %2137 = vmatprep.subr.bf16.mxu0 %v1470
    %2138 = vmatpush1.bf16.msra.mxu0 %v1469
    %2139 = vmatprep.subr.bf16.mxu0 %v1474
    %2140 = vmatpush1.bf16.msra.mxu0 %v1473
    %2141 = vmatprep.subr.bf16.mxu0 %v1478
    %2142 = vmatpush1.bf16.msra.mxu0 %v1477
    %2143 = vmatprep.subr.bf16.mxu0 %v1482
    %2144 = vmatpush1.bf16.msra.mxu0 %v1481
    %2145 = vmatprep.subr.bf16.mxu0 %v1486
    %2146 = vmatpush1.bf16.msra.mxu0 %v1485
    %2147 = vmatprep.subr.bf16.mxu0 %v1490
    %2148 = vmatpush1.bf16.msra.mxu0 %v1489
    %2149 = vmatprep.subr.bf16.mxu0 %v1494
    %2150 = vmatpush1.bf16.msra.mxu0 %v1493
    %2151 = vmatprep.subr.bf16.mxu0 %v1498
    %2152 = vmatpush1.bf16.msra.mxu0 %v1497
    %2153 = vmatprep.subr.bf16.mxu0 %v1502
    %2154 = vmatpush1.bf16.msra.mxu0 %v1501
    %2155 = vmatprep.subr.bf16.mxu0 %v1506
    %2156 = vmatpush1.bf16.msra.mxu0 %v1505
    %2157 = vmatprep.subr.bf16.mxu0 %v1510
    %2158 = vmatpush1.bf16.msra.mxu0 %v1509
    %2159 = vmatprep.subr.bf16.mxu0 %v1514
    %2160 = vmatpush1.bf16.msra.mxu0 %v1513
    %2161 = vmatprep.subr.bf16.mxu0 %v1518
    %2162 = vmatpush1.bf16.msra.mxu0 %v1517
    %2163 = vmatprep.mubr.bf16.mxu0 %v402
    %2164 = vmatmul.mubr.bf16.gmra.mrb[0].mxu0 %v401
    %v2165 = vpop.f32.mrb[0].mxu0
    %v2166 = vadd.f32 %v678, %v2165
    %v2167 = vpop.f32.mrb[0].mxu0
    %v2168 = vadd.f32 %v682, %v2167
    %v2169 = vpop.f32.mrb[0].mxu0
    %v2170 = vpop.f32.mrb[0].mxu0
    %2171 = vdwg.mxu0
    %2172 = vmatprep.subr.bf16.mxu0 %v1522
    %2173 = vmatpush1.bf16.msra.mxu0 %v1521
    %2174 = vmatprep.subr.bf16.mxu0 %v1526
    %2175 = vmatpush1.bf16.msra.mxu0 %v1525
    %2176 = vmatprep.subr.bf16.mxu0 %v1530
    %2177 = vmatpush1.bf16.msra.mxu0 %v1529
    %2178 = vmatprep.subr.bf16.mxu0 %v1534
    %2179 = vmatpush1.bf16.msra.mxu0 %v1533
    %2180 = vmatprep.subr.bf16.mxu0 %v1538
    %2181 = vmatpush1.bf16.msra.mxu0 %v1537
    %2182 = vmatprep.subr.bf16.mxu0 %v1542
    %2183 = vmatpush1.bf16.msra.mxu0 %v1541
    %2184 = vmatprep.subr.bf16.mxu0 %v1546
    %2185 = vmatpush1.bf16.msra.mxu0 %v1545
    %2186 = vmatprep.subr.bf16.mxu0 %v1550
    %2187 = vmatpush1.bf16.msra.mxu0 %v1549
    %2188 = vmatprep.subr.bf16.mxu0 %v1554
    %2189 = vmatpush1.bf16.msra.mxu0 %v1553
    %2190 = vmatprep.subr.bf16.mxu0 %v1558
    %2191 = vmatpush1.bf16.msra.mxu0 %v1557
    %2192 = vmatprep.subr.bf16.mxu0 %v1562
    %2193 = vmatpush1.bf16.msra.mxu0 %v1561
    %2194 = vmatprep.subr.bf16.mxu0 %v1566
    %2195 = vmatpush1.bf16.msra.mxu0 %v1565
    %2196 = vmatprep.subr.bf16.mxu0 %v1570
    %2197 = vmatpush1.bf16.msra.mxu0 %v1569
    %2198 = vmatprep.subr.bf16.mxu0 %v1574
    %2199 = vmatpush1.bf16.msra.mxu0 %v1573
    %2200 = vmatprep.subr.bf16.mxu0 %v1578
    %2201 = vmatpush1.bf16.msra.mxu0 %v1577
    %2202 = vmatprep.subr.bf16.mxu0 %v1582
    %2203 = vmatpush1.bf16.msra.mxu0 %v1581
    %2204 = vmatprep.mubr.bf16.mxu0 %v404
    %2205 = vmatmul.mubr.bf16.gmra.mrb[0].mxu0 %v403
    %v2206 = vpop.f32.mrb[0].mxu0
    %v2207 = vadd.f32 %v2166, %v2206
    %v2208 = vpop.f32.mrb[0].mxu0
    %v2209 = vadd.f32 %v2168, %v2208
    %v2210 = vpop.f32.mrb[0].mxu0
    %v2211 = vpop.f32.mrb[0].mxu0
    %2212 = vdwg.mxu0
    %2213 = vmatprep.subr.bf16.mxu0 %v1586
    %2214 = vmatpush1.bf16.msra.mxu0 %v1585
    %2215 = vmatprep.subr.bf16.mxu0 %v1590
    %2216 = vmatpush1.bf16.msra.mxu0 %v1589
    %2217 = vmatprep.subr.bf16.mxu0 %v1594
    %2218 = vmatpush1.bf16.msra.mxu0 %v1593
    %2219 = vmatprep.subr.bf16.mxu0 %v1598
    %2220 = vmatpush1.bf16.msra.mxu0 %v1597
    %2221 = vmatprep.subr.bf16.mxu0 %v1602
    %2222 = vmatpush1.bf16.msra.mxu0 %v1601
    %2223 = vmatprep.subr.bf16.mxu0 %v1606
    %2224 = vmatpush1.bf16.msra.mxu0 %v1605
    %2225 = vmatprep.subr.bf16.mxu0 %v1610
    %2226 = vmatpush1.bf16.msra.mxu0 %v1609
    %2227 = vmatprep.subr.bf16.mxu0 %v1614
    %2228 = vmatpush1.bf16.msra.mxu0 %v1613
    %2229 = vmatprep.subr.bf16.mxu0 %v1618
    %2230 = vmatpush1.bf16.msra.mxu0 %v1617
    %2231 = vmatprep.subr.bf16.mxu0 %v1622
    %2232 = vmatpush1.bf16.msra.mxu0 %v1621
    %2233 = vmatprep.subr.bf16.mxu0 %v1626
    %2234 = vmatpush1.bf16.msra.mxu0 %v1625
    %2235 = vmatprep.subr.bf16.mxu0 %v1630
    %2236 = vmatpush1.bf16.msra.mxu0 %v1629
    %2237 = vmatprep.subr.bf16.mxu0 %v1634
    %2238 = vmatpush1.bf16.msra.mxu0 %v1633
    %2239 = vmatprep.subr.bf16.mxu0 %v1638
    %2240 = vmatpush1.bf16.msra.mxu0 %v1637
    %2241 = vmatprep.subr.bf16.mxu0 %v1642
    %2242 = vmatpush1.bf16.msra.mxu0 %v1641
    %2243 = vmatprep.subr.bf16.mxu0 %v1646
    %2244 = vmatpush1.bf16.msra.mxu0 %v1645
    %2245 = vmatprep.mubr.bf16.mxu0 %v406
    %2246 = vmatmul.mubr.bf16.gmra.mrb[0].mxu0 %v405
    %v2247 = vpop.f32.mrb[0].mxu0
    %v2248 = vadd.f32 %v2207, %v2247
    %v2249 = vpop.f32.mrb[0].mxu0
    %v2250 = vadd.f32 %v2209, %v2249
    %v2251 = vpop.f32.mrb[0].mxu0
    %v2252 = vpop.f32.mrb[0].mxu0
    %2253 = vdwg.mxu0
    %2254 = vmatprep.subr.bf16.mxu0 %v1650
    %2255 = vmatpush1.bf16.msra.mxu0 %v1649
    %2256 = vmatprep.subr.bf16.mxu0 %v1654
    %2257 = vmatpush1.bf16.msra.mxu0 %v1653
    %2258 = vmatprep.subr.bf16.mxu0 %v1658
    %2259 = vmatpush1.bf16.msra.mxu0 %v1657
    %2260 = vmatprep.subr.bf16.mxu0 %v1662
    %2261 = vmatpush1.bf16.msra.mxu0 %v1661
    %2262 = vmatprep.subr.bf16.mxu0 %v1666
    %2263 = vmatpush1.bf16.msra.mxu0 %v1665
    %2264 = vmatprep.subr.bf16.mxu0 %v1670
    %2265 = vmatpush1.bf16.msra.mxu0 %v1669
    %2266 = vmatprep.subr.bf16.mxu0 %v1674
    %2267 = vmatpush1.bf16.msra.mxu0 %v1673
    %2268 = vmatprep.subr.bf16.mxu0 %v1678
    %2269 = vmatpush1.bf16.msra.mxu0 %v1677
    %2270 = vmatprep.subr.bf16.mxu0 %v1682
    %2271 = vmatpush1.bf16.msra.mxu0 %v1681
    %2272 = vmatprep.subr.bf16.mxu0 %v1686
    %2273 = vmatpush1.bf16.msra.mxu0 %v1685
    %2274 = vmatprep.subr.bf16.mxu0 %v1690
    %2275 = vmatpush1.bf16.msra.mxu0 %v1689
    %2276 = vmatprep.subr.bf16.mxu0 %v1694
    %2277 = vmatpush1.bf16.msra.mxu0 %v1693
    %2278 = vmatprep.subr.bf16.mxu0 %v1698
    %2279 = vmatpush1.bf16.msra.mxu0 %v1697
    %2280 = vmatprep.subr.bf16.mxu0 %v1702
    %2281 = vmatpush1.bf16.msra.mxu0 %v1701
    %2282 = vmatprep.subr.bf16.mxu0 %v1706
    %2283 = vmatpush1.bf16.msra.mxu0 %v1705
    %2284 = vmatprep.subr.bf16.mxu0 %v1710
    %2285 = vmatpush1.bf16.msra.mxu0 %v1709
    %2286 = vmatprep.mubr.bf16.mxu0 %v408
    %2287 = vmatmul.mubr.bf16.gmra.mrb[0].mxu0 %v407
    %v2288 = vpop.f32.mrb[0].mxu0
    %v2289 = vadd.f32 %v2248, %v2288
    %v2290 = vpop.f32.mrb[0].mxu0
    %v2291 = vadd.f32 %v2250, %v2290
    %v2292 = vpop.f32.mrb[0].mxu0
    %v2293 = vpop.f32.mrb[0].mxu0
    %2294 = vdwg.mxu0
    %v2295 = vmax.f32 %v2125, 0.0
    %v2296 = vmax.f32 %v2127, 0.0
    %v2297 = vmax.f32 %v2289, 0.0
    %v2298 = vmax.f32 %v2291, 0.0
    %v2299 = vpack.c.bf16 %v2295, %v2295
    %v2300 = vpack.c.bf16 %v2296, %v2296
    %v2301 = vpack.c.bf16 %v2297, %v2297
    %v2302 = vpack.c.bf16 %v2298, %v2298
    %v2303 = vld [vmem:[#allocation9] sm:$0xf]
    %v2304 = vld [vmem:[#allocation9 + $0x4] sm:$0xf]
    %v2305 = vld [vmem:[#allocation9 + $0x8] sm:$0xf]
    %v2306 = vld [vmem:[#allocation9 + $0xc] sm:$0xf]
    %v2307 = vld [vmem:[#allocation9 + $0x10] sm:$0xf]
    %v2308 = vld [vmem:[#allocation9 + $0x14] sm:$0xf]
    %v2309 = vld [vmem:[#allocation9 + $0x18] sm:$0xf]
    %v2310 = vld [vmem:[#allocation9 + $0x1c] sm:$0xf]
    %v2311 = vld [vmem:[#allocation9 + $0x20] sm:$0xf]
    %v2312 = vld [vmem:[#allocation9 + $0x24] sm:$0xf]
    %v2313 = vld [vmem:[#allocation9 + $0x28] sm:$0xf]
    %v2314 = vld [vmem:[#allocation9 + $0x2c] sm:$0xf]
    %v2315 = vld [vmem:[#allocation9 + $0x30] sm:$0xf]
    %v2316 = vld [vmem:[#allocation9 + $0x34] sm:$0xf]
    %v2317 = vld [vmem:[#allocation9 + $0x38] sm:$0xf]
    %v2318 = vld [vmem:[#allocation9 + $0x3c] sm:$0xf]
    %v2319 = vld [vmem:[#allocation9 + $0x40] sm:$0xf]
    %v2320 = vld [vmem:[#allocation9 + $0x44] sm:$0xf]
    %v2321 = vld [vmem:[#allocation9 + $0x48] sm:$0xf]
    %v2322 = vld [vmem:[#allocation9 + $0x4c] sm:$0xf]
    %v2323 = vld [vmem:[#allocation9 + $0x50] sm:$0xf]
    %v2324 = vld [vmem:[#allocation9 + $0x54] sm:$0xf]
    %v2325 = vld [vmem:[#allocation9 + $0x58] sm:$0xf]
    %v2326 = vld [vmem:[#allocation9 + $0x5c] sm:$0xf]
    %v2327 = vld [vmem:[#allocation9 + $0x60] sm:$0xf]
    %v2328 = vld [vmem:[#allocation9 + $0x64] sm:$0xf]
    %v2329 = vld [vmem:[#allocation9 + $0x68] sm:$0xf]
    %v2330 = vld [vmem:[#allocation9 + $0x6c] sm:$0xf]
    %v2331 = vld [vmem:[#allocation9 + $0x70] sm:$0xf]
    %v2332 = vld [vmem:[#allocation9 + $0x74] sm:$0xf]
    %v2333 = vld [vmem:[#allocation9 + $0x78] sm:$0xf]
    %v2334 = vld [vmem:[#allocation9 + $0x7c] sm:$0xf]
    %v2335 = vld [vmem:[#allocation9 + $0x80] sm:$0xf]
    %v2336 = vld [vmem:[#allocation9 + $0x84] sm:$0xf]
    %v2337 = vld [vmem:[#allocation9 + $0x88] sm:$0xf]
    %v2338 = vld [vmem:[#allocation9 + $0x8c] sm:$0xf]
    %v2339 = vld [vmem:[#allocation9 + $0x90] sm:$0xf]
    %v2340 = vld [vmem:[#allocation9 + $0x94] sm:$0xf]
    %v2341 = vld [vmem:[#allocation9 + $0x98] sm:$0xf]
    %v2342 = vld [vmem:[#allocation9 + $0x9c] sm:$0xf]
    %v2343 = vld [vmem:[#allocation9 + $0xa0] sm:$0xf]
    %v2344 = vld [vmem:[#allocation9 + $0xa4] sm:$0xf]
    %v2345 = vld [vmem:[#allocation9 + $0xa8] sm:$0xf]
    %v2346 = vld [vmem:[#allocation9 + $0xac] sm:$0xf]
    %v2347 = vld [vmem:[#allocation9 + $0xb0] sm:$0xf]
    %v2348 = vld [vmem:[#allocation9 + $0xb4] sm:$0xf]
    %v2349 = vld [vmem:[#allocation9 + $0xb8] sm:$0xf]
    %v2350 = vld [vmem:[#allocation9 + $0xbc] sm:$0xf]
    %v2351 = vld [vmem:[#allocation9 + $0xc0] sm:$0xf]
    %v2352 = vld [vmem:[#allocation9 + $0xc4] sm:$0xf]
    %v2353 = vld [vmem:[#allocation9 + $0xc8] sm:$0xf]
    %v2354 = vld [vmem:[#allocation9 + $0xcc] sm:$0xf]
    %v2355 = vld [vmem:[#allocation9 + $0xd0] sm:$0xf]
    %v2356 = vld [vmem:[#allocation9 + $0xd4] sm:$0xf]
    %v2357 = vld [vmem:[#allocation9 + $0xd8] sm:$0xf]
    %v2358 = vld [vmem:[#allocation9 + $0xdc] sm:$0xf]
    %v2359 = vld [vmem:[#allocation9 + $0xe0] sm:$0xf]
    %v2360 = vld [vmem:[#allocation9 + $0xe4] sm:$0xf]
    %v2361 = vld [vmem:[#allocation9 + $0xe8] sm:$0xf]
    %v2362 = vld [vmem:[#allocation9 + $0xec] sm:$0xf]
    %v2363 = vld [vmem:[#allocation9 + $0xf0] sm:$0xf]
    %v2364 = vld [vmem:[#allocation9 + $0xf4] sm:$0xf]
    %v2365 = vld [vmem:[#allocation9 + $0xf8] sm:$0xf]
    %v2366 = vld [vmem:[#allocation9 + $0xfc] sm:$0xf]
    %s2367 = sld [smem:[#allocation2]]
    %v2368 = vld [vmem:[%s7] sm:$0x1]
    %v2370 = vlaneseq
    %v2371 = vshrl.u32 %v2370, 7
    %v2372 = vsub.s32 0, %v2371
    %v2373 = vrot.slane %v2368, %v2372
    %v2439 = vunpack.c.l.b16 %v2303
    %v2440 = vunpack.c.l.b16 %v2304
    %v2441 = vunpack.c.l.b16 %v2305
    %v2442 = vunpack.c.l.b16 %v2306
    %v2443 = vunpack.c.l.b16 %v2307
    %v2444 = vunpack.c.l.b16 %v2308
    %v2445 = vunpack.c.l.b16 %v2309
    %v2446 = vunpack.c.l.b16 %v2310
    %v2447 = vunpack.c.l.b16 %v2311
    %v2448 = vunpack.c.l.b16 %v2312
    %v2449 = vunpack.c.l.b16 %v2313
    %v2450 = vunpack.c.l.b16 %v2314
    %v2451 = vunpack.c.l.b16 %v2315
    %v2452 = vunpack.c.l.b16 %v2316
    %v2453 = vunpack.c.l.b16 %v2317
    %v2454 = vunpack.c.l.b16 %v2318
    %v2455 = vunpack.c.l.b16 %v2319
    %v2456 = vunpack.c.l.b16 %v2320
    %v2457 = vunpack.c.l.b16 %v2321
    %v2458 = vunpack.c.l.b16 %v2322
    %v2459 = vunpack.c.l.b16 %v2323
    %v2460 = vunpack.c.l.b16 %v2324
    %v2461 = vunpack.c.l.b16 %v2325
    %v2462 = vunpack.c.l.b16 %v2326
    %v2463 = vunpack.c.l.b16 %v2327
    %v2464 = vunpack.c.l.b16 %v2328
    %v2465 = vunpack.c.l.b16 %v2329
    %v2466 = vunpack.c.l.b16 %v2330
    %v2467 = vunpack.c.l.b16 %v2331
    %v2468 = vunpack.c.l.b16 %v2332
    %v2469 = vunpack.c.l.b16 %v2333
    %v2470 = vunpack.c.l.b16 %v2334
    %v2471 = vunpack.c.l.b16 %v2335
    %v2472 = vunpack.c.l.b16 %v2336
    %v2473 = vunpack.c.l.b16 %v2337
    %v2474 = vunpack.c.l.b16 %v2338
    %v2475 = vunpack.c.l.b16 %v2339
    %v2476 = vunpack.c.l.b16 %v2340
    %v2477 = vunpack.c.l.b16 %v2341
    %v2478 = vunpack.c.l.b16 %v2342
    %v2479 = vunpack.c.l.b16 %v2343
    %v2480 = vunpack.c.l.b16 %v2344
    %v2481 = vunpack.c.l.b16 %v2345
    %v2482 = vunpack.c.l.b16 %v2346
    %v2483 = vunpack.c.l.b16 %v2347
    %v2484 = vunpack.c.l.b16 %v2348
    %v2485 = vunpack.c.l.b16 %v2349
    %v2486 = vunpack.c.l.b16 %v2350
    %v2487 = vunpack.c.l.b16 %v2351
    %v2488 = vunpack.c.l.b16 %v2352
    %v2489 = vunpack.c.l.b16 %v2353
    %v2490 = vunpack.c.l.b16 %v2354
    %v2491 = vunpack.c.l.b16 %v2355
    %v2492 = vunpack.c.l.b16 %v2356
    %v2493 = vunpack.c.l.b16 %v2357
    %v2494 = vunpack.c.l.b16 %v2358
    %v2495 = vunpack.c.l.b16 %v2359
    %v2496 = vunpack.c.l.b16 %v2360
    %v2497 = vunpack.c.l.b16 %v2361
    %v2498 = vunpack.c.l.b16 %v2362
    %v2499 = vunpack.c.l.b16 %v2363
    %v2500 = vunpack.c.l.b16 %v2364
    %v2501 = vunpack.c.l.b16 %v2365
    %v2502 = vunpack.c.l.b16 %v2366
    %v2503 = vpack.c.b16 %v2440, %v2439
    %v2504 = vpack.c.b16 %v2442, %v2441
    %v2505 = vpack.c.b16 %v2444, %v2443
    %v2506 = vpack.c.b16 %v2446, %v2445
    %v2507 = vpack.c.b16 %v2448, %v2447
    %v2508 = vpack.c.b16 %v2450, %v2449
    %v2509 = vpack.c.b16 %v2452, %v2451
    %v2510 = vpack.c.b16 %v2454, %v2453
    %v2511 = vpack.c.b16 %v2456, %v2455
    %v2512 = vpack.c.b16 %v2458, %v2457
    %v2513 = vpack.c.b16 %v2460, %v2459
    %v2514 = vpack.c.b16 %v2462, %v2461
    %v2515 = vpack.c.b16 %v2464, %v2463
    %v2516 = vpack.c.b16 %v2466, %v2465
    %v2517 = vpack.c.b16 %v2468, %v2467
    %v2518 = vpack.c.b16 %v2470, %v2469
    %v2519 = vpack.c.b16 %v2472, %v2471
    %v2520 = vpack.c.b16 %v2474, %v2473
    %v2521 = vpack.c.b16 %v2476, %v2475
    %v2522 = vpack.c.b16 %v2478, %v2477
    %v2523 = vpack.c.b16 %v2480, %v2479
    %v2524 = vpack.c.b16 %v2482, %v2481
    %v2525 = vpack.c.b16 %v2484, %v2483
    %v2526 = vpack.c.b16 %v2486, %v2485
    %v2527 = vpack.c.b16 %v2488, %v2487
    %v2528 = vpack.c.b16 %v2490, %v2489
    %v2529 = vpack.c.b16 %v2492, %v2491
    %v2530 = vpack.c.b16 %v2494, %v2493
    %v2531 = vpack.c.b16 %v2496, %v2495
    %v2532 = vpack.c.b16 %v2498, %v2497
    %v2533 = vpack.c.b16 %v2500, %v2499
    %v2534 = vpack.c.b16 %v2502, %v2501
    %2567 = vmatprep.subr.bf16.mxu0 0
    %2568 = vmatpush1.bf16.msra.mxu0 %v2503
    %2569 = vmatprep.subr.bf16.mxu0 0
    %2570 = vmatpush1.bf16.msra.mxu0 %v2504
    %2571 = vmatprep.subr.bf16.mxu0 0
    %2572 = vmatpush1.bf16.msra.mxu0 %v2505
    %2573 = vmatprep.subr.bf16.mxu0 0
    %2574 = vmatpush1.bf16.msra.mxu0 %v2506
    %2575 = vmatprep.subr.bf16.mxu0 0
    %2576 = vmatpush1.bf16.msra.mxu0 %v2507
    %2577 = vmatprep.subr.bf16.mxu0 0
    %2578 = vmatpush1.bf16.msra.mxu0 %v2508
    %2579 = vmatprep.subr.bf16.mxu0 0
    %2580 = vmatpush1.bf16.msra.mxu0 %v2509
    %2581 = vmatprep.subr.bf16.mxu0 0
    %2582 = vmatpush1.bf16.msra.mxu0 %v2510
    %2583 = vmatprep.subr.bf16.mxu0 0
    %2584 = vmatpush1.bf16.msra.mxu0 %v2511
    %2585 = vmatprep.subr.bf16.mxu0 0
    %2586 = vmatpush1.bf16.msra.mxu0 %v2512
    %2587 = vmatprep.subr.bf16.mxu0 0
    %2588 = vmatpush1.bf16.msra.mxu0 %v2513
    %2589 = vmatprep.subr.bf16.mxu0 0
    %2590 = vmatpush1.bf16.msra.mxu0 %v2514
    %2591 = vmatprep.subr.bf16.mxu0 0
    %2592 = vmatpush1.bf16.msra.mxu0 %v2515
    %2593 = vmatprep.subr.bf16.mxu0 0
    %2594 = vmatpush1.bf16.msra.mxu0 %v2516
    %2595 = vmatprep.subr.bf16.mxu0 0
    %2596 = vmatpush1.bf16.msra.mxu0 %v2517
    %2597 = vmatprep.subr.bf16.mxu0 0
    %2598 = vmatpush1.bf16.msra.mxu0 %v2518
    %2599 = vmatprep.mubr.bf16.mxu0 %v2300
    %2600 = vmatmul.mubr.bf16.gmra.mrb[0].mxu0 %v2299
    %v2601 = vpop.f32.mrb[0].mxu0
    %v2602 = vadd.f32 %v2373, %v2601
    %v2603 = vpop.f32.mrb[0].mxu0
    %v2604 = vpop.f32.mrb[0].mxu0
    %v2605 = vpop.f32.mrb[0].mxu0
    %2606 = vdwg.mxu0
    %2607 = vmatprep.subr.bf16.mxu0 0
    %2608 = vmatpush1.bf16.msra.mxu0 %v2519
    %2609 = vmatprep.subr.bf16.mxu0 0
    %2610 = vmatpush1.bf16.msra.mxu0 %v2520
    %2611 = vmatprep.subr.bf16.mxu0 0
    %2612 = vmatpush1.bf16.msra.mxu0 %v2521
    %2613 = vmatprep.subr.bf16.mxu0 0
    %2614 = vmatpush1.bf16.msra.mxu0 %v2522
    %2615 = vmatprep.subr.bf16.mxu0 0
    %2616 = vmatpush1.bf16.msra.mxu0 %v2523
    %2617 = vmatprep.subr.bf16.mxu0 0
    %2618 = vmatpush1.bf16.msra.mxu0 %v2524
    %2619 = vmatprep.subr.bf16.mxu0 0
    %2620 = vmatpush1.bf16.msra.mxu0 %v2525
    %2621 = vmatprep.subr.bf16.mxu0 0
    %2622 = vmatpush1.bf16.msra.mxu0 %v2526
    %2623 = vmatprep.subr.bf16.mxu0 0
    %2624 = vmatpush1.bf16.msra.mxu0 %v2527
    %2625 = vmatprep.subr.bf16.mxu0 0
    %2626 = vmatpush1.bf16.msra.mxu0 %v2528
    %2627 = vmatprep.subr.bf16.mxu0 0
    %2628 = vmatpush1.bf16.msra.mxu0 %v2529
    %2629 = vmatprep.subr.bf16.mxu0 0
    %2630 = vmatpush1.bf16.msra.mxu0 %v2530
    %2631 = vmatprep.subr.bf16.mxu0 0
    %2632 = vmatpush1.bf16.msra.mxu0 %v2531
    %2633 = vmatprep.subr.bf16.mxu0 0
    %2634 = vmatpush1.bf16.msra.mxu0 %v2532
    %2635 = vmatprep.subr.bf16.mxu0 0
    %2636 = vmatpush1.bf16.msra.mxu0 %v2533
    %2637 = vmatprep.subr.bf16.mxu0 0
    %2638 = vmatpush1.bf16.msra.mxu0 %v2534
    %2639 = vmatprep.mubr.bf16.mxu0 %v2302
    %2640 = vmatmul.mubr.bf16.gmra.mrb[0].mxu0 %v2301
    %v2641 = vpop.f32.mrb[0].mxu0
    %v2642 = vadd.f32 %v2602, %v2641
    %v2643 = vpop.f32.mrb[0].mxu0
    %v2644 = vpop.f32.mrb[0].mxu0
    %v2645 = vpop.f32.mrb[0].mxu0
    %2646 = vdwg.mxu0
    %v2647 = vtanh.pop %v2642
    %v2648 = vstv %s2367
    %v2649 = vmul.f32 %v2648, %v2647
    %2650 = vst [vmem:[#allocation11] sm:$0xff] %v2649
    // Predicated region
    $region50: #{tpu_custom_call.1} parent=1 // pred_check
      _
    $region51: #{tpu_custom_call.1} parent=1 // pred_check_branch
      %2652 = sbr.rel (0) target = $region53
    $region52: #{tpu_custom_call.1} parent=1 // pred_region
      %s2654 = ssub.s32 128, 128
      %2655 = vsyncadd [#allocation5], %s2654
      %s2657 = sshll.u32 [#allocation11], 4
      %s2658 = int_to_ptr.vmem [resolvable:$true] %s2657
      %2660 = dma.vmem_to_hbm [thread:$0]  %s2658, 128, %s8, [#allocation5]
    $region53: #{tpu_custom_call.1} parent=1 // pred_fallthru
      _
    // Predicated region
    $region54: #{tpu_custom_call.1} parent=1 // pred_check
      _
    $region55: #{tpu_custom_call.1} parent=1 // pred_check_branch
      %2662 = sbr.rel (0) target = $region57
    $region56: #{tpu_custom_call.1} parent=1 // pred_region
      %2663 = dma.done [#allocation5], 128
    $region57: #{tpu_custom_call.1} parent=1 // pred_fallthru
      _
    %2664 = vsyncpa [#allocation4], 1
    %2665 = vsyncpa [#allocation7], 1
    %2666 = vsyncpa [#allocation10], 1
    %2667 = vsyncpa [#allocation5], 1

</llo_original>
